<compile_context>
chip_gen: v5e
topology: v5e:2x2
jax: 0.10.0
libtpu: 0.0.40
codegen_flags: <defaults>
</compile_context>

<pallas_src>
import functools

import jax
import jax.numpy as jnp
from jax.experimental import pallas as pl
from jax.experimental.pallas import tpu as pltpu

LANE = 128  # lane-dense padding for the classifier output


# ----------------------------- helpers (traced inside the kernel) ------------

def _layernorm(x, gamma, beta, eps=1e-12):
    mean = jnp.mean(x, axis=-1, keepdims=True)
    var = jnp.mean((x - mean) ** 2, axis=-1, keepdims=True)
    return (x - mean) * jax.lax.rsqrt(var + eps) * gamma + beta


def _gelu(x):
    # tanh-approximate GELU; phobert uses erf-GELU (numerically very close).
    c = 0.7978845608028654
    return 0.5 * x * (1.0 + jnp.tanh(c * (x + 0.044715 * x * x * x)))


# ----------------------------- fused Pallas kernel ---------------------------

def encoder_layer_kernel(x_ref, bias_ref, wqkv_ref, wo_ref, w1_ref, b1_ref,
                         w2_ref, vecs_ref, fcw_ref, fcb_ref,
                         logits_ref, x_sc, *, num_heads):
    """Grid = (sequence b [parallel], layer l [arbitrary]).

    bf16 activations for this sequence live in the `x_sc` VMEM scratch across the
    inner layer axis; the CLS + classifier head runs on the last layer step.
    """
    l = pl.program_id(1)
    n_layers = pl.num_programs(1)

    @pl.when(l == 0)
    def _():
        x_sc[...] = x_ref[0]                      # (S, H) bf16, post-embedding-LN

    S, H = x_sc.shape
    nh = num_heads
    dh = H // nh
    scale = 1.0 / float(dh) ** 0.5

    vecs = vecs_ref[0]                            # (9, H) f32 packed per-layer vectors
    bq, bk, bv, bo = vecs[0], vecs[1], vecs[2], vecs[3]
    g1, be1 = vecs[4], vecs[5]
    b2, g2, be2 = vecs[6], vecs[7], vecs[8]
    b1 = b1_ref[...][0, 0]                        # (F,) f32

    x_bf = x_sc[...]                              # (S, H) bf16 resident activations
    x_f32 = x_bf.astype(jnp.float32)              # upcast per-step for residual/LN

    # ---- fused QKV projection: ONE (S,H) x (H,3H) MXU matmul, f32 accumulate ----
    qkv = jnp.dot(x_bf, wqkv_ref[0], preferred_element_type=jnp.float32)   # (S, 3H)
    q = (qkv[:, 0 * H:1 * H] + bq) * scale        # 1/sqrt(dh) folded into Q
    k = qkv[:, 1 * H:2 * H] + bk
    v = qkv[:, 2 * H:3 * H] + bv

    def head_major(t):                            # (S, H) f32 -> (nh, S, dh) bf16
        tb = t.astype(jnp.bfloat16)
        return jnp.stack([tb[:, h * dh:(h + 1) * dh] for h in range(nh)], axis=0)

    qh, kh, vh = head_major(q), head_major(k), head_major(v)

    # ---- attention: head-leading batched einsums (single batch dim) -------------
    s = jnp.einsum('hqd,hkd->hqk', qh, kh,
                   preferred_element_type=jnp.float32)        # (nh, S, S) f32
    s = s + bias_ref[...]                         # (1,1,S) mask bias broadcast over heads/rows
    s = s - jnp.max(s, axis=-1, keepdims=True)    # f32 softmax statistics
    p = jnp.exp(s)
    p = p * pl.reciprocal(jnp.sum(p, axis=-1, keepdims=True), approx=True)
    ctx_h = jnp.einsum('hqk,hkd->hqd', p.astype(jnp.bfloat16), vh,
                       preferred_element_type=jnp.float32)    # (nh, S, dh) f32
    ctx = jnp.concatenate([ctx_h[h] for h in range(nh)], axis=-1)   # (S, H) f32

    # ---- attention output projection + residual + LayerNorm ---------------------
    attn_out = jnp.dot(ctx.astype(jnp.bfloat16), wo_ref[0],
                       preferred_element_type=jnp.float32) + bo
    h1 = _layernorm(x_f32 + attn_out, g1, be1)    # (S, H) f32

    # ---- feed-forward (GELU fused between the two GEMMs) ------------------------
    ff = _gelu(jnp.dot(h1.astype(jnp.bfloat16), w1_ref[0],
                       preferred_element_type=jnp.float32) + b1)
    ff = jnp.dot(ff.astype(jnp.bfloat16), w2_ref[0],
                 preferred_element_type=jnp.float32) + b2
    y = _layernorm(h1 + ff, g2, be2)

    x_sc[...] = y.astype(jnp.bfloat16)            # bf16 resident activations

    # ---- last layer: CLS pooling + dropout + classifier head --------------------
    # TODO(synk): nn.Dropout(p=0.3) treated as identity (inference / eval mode).
    @pl.when(l == n_layers - 1)
    def _():
        cls = y[0:1, :].astype(jnp.bfloat16)      # (1, H) CLS token
        out = jnp.dot(cls, fcw_ref[...],
                      preferred_element_type=jnp.float32) + fcb_ref[...]   # (1, n_pad)
        logits_ref[...] = out.reshape(logits_ref.shape)


# ----------------------------- wrapper ---------------------------------------

def _pick_vmem_limit():
    # Raise the scoped VMEM limit (default 32 MiB) so per-layer weight blocks stay
    # double-buffered at real (H=768) shapes, leaving headroom under the physical
    # capacity of the current generation (128 MiB v5e/v6e, 64 MiB v7x).
    try:
        cap = pltpu.get_tpu_info().vmem_capacity_bytes
    except Exception:
        cap = 64 * 1024 * 1024
    return int(min(110 * 1024 * 1024, cap * 3 // 4))


def toxic_comment_classifier_forward(params, input_ids, attention_mask, *, num_heads):
    B, S = input_ids.shape
    H = params['word_emb'].shape[1]
    L = params['wqkv'].shape[0]
    F = params['w1'].shape[2]
    n_pad = params['fc_w'].shape[1]

    # ---- plain-JAX glue: embedding gather + embedding LayerNorm (one-shot) ------
    # TODO(synk): token_type embeddings omitted (single-segment input => constant offset).
    x = (params['word_emb'][input_ids]
         + params['pos_emb'][jnp.arange(S)][None, :, :]).astype(jnp.float32)
    g, b = params['emb_ln'][0], params['emb_ln'][1]
    mean = jnp.mean(x, axis=-1, keepdims=True)
    var = jnp.mean((x - mean) ** 2, axis=-1, keepdims=True)
    x = ((x - mean) * jax.lax.rsqrt(var + 1e-12) * g + b).astype(jnp.bfloat16)

    # Additive attention bias, (B, 1, S), NOT tiled by heads (broadcast in-kernel).
    bias = ((1.0 - attention_mask.astype(jnp.float32)) * (-1e9))[:, None, :]

    grid = (B, L)   # one sequence per "parallel" step; layers inner "arbitrary"

    grid_spec = pltpu.PrefetchScalarGridSpec(
        num_scalar_prefetch=0,
        grid=grid,
        in_specs=[
            pl.BlockSpec((1, S, H), lambda b, l: (b, 0, 0)),          # x (bf16, post emb-LN)
            pl.BlockSpec((1, 1, S), lambda b, l: (b, 0, 0)),          # attn mask bias
            pl.BlockSpec((1, H, 3 * H), lambda b, l: (l, 0, 0)),      # wqkv (bf16)
            pl.BlockSpec((1, H, H), lambda b, l: (l, 0, 0)),          # wo   (bf16)
            pl.BlockSpec((1, H, F), lambda b, l: (l, 0, 0)),          # w1   (bf16)
            pl.BlockSpec((1, 1, F), lambda b, l: (l, 0, 0)),          # b1
            pl.BlockSpec((1, F, H), lambda b, l: (l, 0, 0)),          # w2   (bf16)
            pl.BlockSpec((1, 9, H), lambda b, l: (l, 0, 0)),          # packed bias/LN vecs
            pl.BlockSpec((H, n_pad), lambda b, l: (0, 0)),            # fc_w (lane-dense)
            pl.BlockSpec((1, n_pad), lambda b, l: (0, 0)),            # fc_b
        ],
        out_specs=pl.BlockSpec((1, 1, n_pad), lambda b, l: (b, 0, 0)),  # lane-dense logits
        scratch_shapes=[pltpu.VMEM((S, H), jnp.bfloat16)],              # resident acts (bf16)
    )

    logits_pad = pl.pallas_call(
        functools.partial(encoder_layer_kernel, num_heads=num_heads),
        out_shape=jax.ShapeDtypeStruct((B, 1, n_pad), jnp.float32),
        grid_spec=grid_spec,
        compiler_params=pltpu.CompilerParams(
            dimension_semantics=("parallel", "arbitrary"),  # batch across cores, layers carry acts
            vmem_limit_bytes=_pick_vmem_limit(),
        ),
    )(x, bias, params['wqkv'], params['wo'], params['w1'], params['b1'],
      params['w2'], params['vecs'], params['fc_w'], params['fc_b'])

    return logits_pad[:, 0, :params['n_classes']]


# ----------------------------- params ----------------------------------------

def init_params(key, *, vocab, max_pos, hidden, ffn, layers, n_classes):
    keys = jax.random.split(key, 7)

    def dense(k, shape, dtype=jnp.float32):
        return (0.02 * jax.random.normal(k, shape)).astype(dtype)

    # packed per-layer vectors, rows: bq, bk, bv, bo, g1, be1, b2, g2, be2
    vec_rows = jnp.stack([
        jnp.zeros(hidden), jnp.zeros(hidden), jnp.zeros(hidden), jnp.zeros(hidden),
        jnp.ones(hidden), jnp.zeros(hidden),
        jnp.zeros(hidden), jnp.ones(hidden), jnp.zeros(hidden),
    ]).astype(jnp.float32)

    n_pad = LANE
    fc_w = jnp.zeros((hidden, n_pad), jnp.float32)
    fc_w = fc_w.at[:, :n_classes].set(dense(keys[2], (hidden, n_classes)))

    return {
        'n_classes': n_classes,
        'word_emb': dense(keys[0], (vocab, hidden)),
        'pos_emb': dense(keys[1], (max_pos, hidden)),
        'emb_ln': jnp.stack([jnp.ones(hidden), jnp.zeros(hidden)]).astype(jnp.float32),
        # per-layer weights stacked along a leading layer axis; matmul weights bf16
        'wqkv': dense(keys[3], (layers, hidden, 3 * hidden), jnp.bfloat16),
        'wo': dense(keys[4], (layers, hidden, hidden), jnp.bfloat16),
        'w1': dense(keys[5], (layers, hidden, ffn), jnp.bfloat16),
        'w2': dense(keys[6], (layers, ffn, hidden), jnp.bfloat16),
        'b1': jnp.zeros((layers, 1, ffn), jnp.float32),
        'vecs': jnp.tile(vec_rows[None], (layers, 1, 1)),       # (L, 9, H) f32
        'fc_w': fc_w.astype(jnp.bfloat16),                      # lane-dense padded
        'fc_b': jnp.zeros((1, n_pad), jnp.float32),
    }


# ----------------------------- main -------------------------------------------

if __name__ == "__main__":
    B, S = 2, 8
    HIDDEN, HEADS, FFN, LAYERS = 32, 4, 64, 2
    VOCAB, MAX_POS, N_CLASSES = 100, 64, 6
    # NOTE: tiny demo config; real phobert-base (H=768, S padded to a multiple of
    # 256/128) uses the exact same kernel structure with lane-aligned shapes.

    key = jax.random.PRNGKey(0)
    k_ids, k_params = jax.random.split(key)

    params = init_params(k_params, vocab=VOCAB, max_pos=MAX_POS, hidden=HIDDEN,
                         ffn=FFN, layers=LAYERS, n_classes=N_CLASSES)

    input_ids = jax.random.randint(k_ids, (B, S), 0, VOCAB, dtype=jnp.int32)
    attention_mask = jnp.ones((B, S), dtype=jnp.int32).at[:, -2:].set(0)  # pad last 2

    logits = toxic_comment_classifier_forward(params, input_ids, attention_mask,
                                              num_heads=HEADS)
    jax.block_until_ready(logits)
    assert logits.shape == (B, N_CLASSES)
    print("KERNEL_OK")
</pallas_src>

<mosaic_0001>
module attributes {stable_mosaic.version = 11 : i64} {
  func.func @encoder_layer_kernel(%arg0: i32, %arg1: i32, %arg2: memref<1x8x32xbf16, #tpu.memory_space<vmem>>, %arg3: memref<1x1x8xf32, #tpu.memory_space<vmem>>, %arg4: memref<1x32x96xbf16, #tpu.memory_space<vmem>>, %arg5: memref<1x32x32xbf16, #tpu.memory_space<vmem>>, %arg6: memref<1x32x64xbf16, #tpu.memory_space<vmem>>, %arg7: memref<1x1x64xf32, #tpu.memory_space<vmem>>, %arg8: memref<1x64x32xbf16, #tpu.memory_space<vmem>>, %arg9: memref<1x9x32xf32, #tpu.memory_space<vmem>>, %arg10: memref<32x128xbf16, #tpu.memory_space<vmem>>, %arg11: memref<1x128xf32, #tpu.memory_space<vmem>>, %arg12: memref<1x1x128xf32, #tpu.memory_space<vmem>>, %arg13: memref<8x32xbf16, #tpu.memory_space<vmem>>) attributes {dimension_semantics = [#tpu.dimension_semantics<parallel>, #tpu.dimension_semantics<arbitrary>], iteration_bounds = array<i64: 2, 2>, scalar_prefetch = 0 : i64, scratch_operands = 1 : i64, tpu.core_type = #tpu.core_type<tc>, window_params = [{transform_indices = @transform_0, window_bounds = array<i64: 1, 8, 32>}, {transform_indices = @transform_1, window_bounds = array<i64: 1, 1, 8>}, {transform_indices = @transform_2, window_bounds = array<i64: 1, 32, 96>}, {transform_indices = @transform_3, window_bounds = array<i64: 1, 32, 32>}, {transform_indices = @transform_4, window_bounds = array<i64: 1, 32, 64>}, {transform_indices = @transform_5, window_bounds = array<i64: 1, 1, 64>}, {transform_indices = @transform_6, window_bounds = array<i64: 1, 64, 32>}, {transform_indices = @transform_7, window_bounds = array<i64: 1, 9, 32>}, {pipeline_mode = #tpu.pipeline_mode<synchronous>, transform_indices = @transform_8, window_bounds = array<i64: 32, 128>}, {pipeline_mode = #tpu.pipeline_mode<synchronous>, transform_indices = @transform_9, window_bounds = array<i64: 1, 128>}, {transform_indices = @transform_10, window_bounds = array<i64: 1, 1, 128>}]} {
    %c0_i32 = arith.constant 0 : i32
    %0 = arith.cmpi eq, %arg1, %c0_i32 : i32
    %1 = arith.extui %0 : i1 to i32
    %c0_i32_0 = arith.constant 0 : i32
    %2 = arith.cmpi ne, %1, %c0_i32_0 : i32
    scf.if %2 {
      %c0_48 = arith.constant 0 : index
      %c0_49 = arith.constant 0 : index
      %c0_50 = arith.constant 0 : index
      %188 = vector.load %arg2[%c0_48, %c0_49, %c0_50] : memref<1x8x32xbf16, #tpu.memory_space<vmem>>, vector<1x8x32xbf16>
      %189 = vector.shape_cast %188 : vector<1x8x32xbf16> to vector<8x32xbf16>
      %c0_51 = arith.constant 0 : index
      %c0_52 = arith.constant 0 : index
      %190 = vector.load %arg13[%c0_51, %c0_52] : memref<8x32xbf16, #tpu.memory_space<vmem>>, vector<8x32xbf16>
      tpu.vector_store %arg13[%c0_51, %c0_52], %189 {strides = array<i32>} : memref<8x32xbf16, #tpu.memory_space<vmem>>, vector<8x32xbf16>,
    } else {
    }
    %c0 = arith.constant 0 : index
    %c0_1 = arith.constant 0 : index
    %c0_2 = arith.constant 0 : index
    %3 = vector.load %arg9[%c0, %c0_1, %c0_2] : memref<1x9x32xf32, #tpu.memory_space<vmem>>, vector<1x9x32xf32>
    %4 = vector.shape_cast %3 : vector<1x9x32xf32> to vector<9x32xf32>
    %5 = vector.extract_strided_slice %4 {offsets = [0, 0], sizes = [1, 32], strides = [1, 1]} : vector<9x32xf32> to vector<1x32xf32>
    %6 = vector.shape_cast %5 : vector<1x32xf32> to vector<32xf32>
    %7 = vector.extract_strided_slice %4 {offsets = [1, 0], sizes = [1, 32], strides = [1, 1]} : vector<9x32xf32> to vector<1x32xf32>
    %8 = vector.shape_cast %7 : vector<1x32xf32> to vector<32xf32>
    %9 = vector.extract_strided_slice %4 {offsets = [2, 0], sizes = [1, 32], strides = [1, 1]} : vector<9x32xf32> to vector<1x32xf32>
    %10 = vector.shape_cast %9 : vector<1x32xf32> to vector<32xf32>
    %11 = vector.extract_strided_slice %4 {offsets = [3, 0], sizes = [1, 32], strides = [1, 1]} : vector<9x32xf32> to vector<1x32xf32>
    %12 = vector.shape_cast %11 : vector<1x32xf32> to vector<32xf32>
    %13 = vector.extract_strided_slice %4 {offsets = [4, 0], sizes = [1, 32], strides = [1, 1]} : vector<9x32xf32> to vector<1x32xf32>
    %14 = vector.shape_cast %13 : vector<1x32xf32> to vector<32xf32>
    %15 = vector.extract_strided_slice %4 {offsets = [5, 0], sizes = [1, 32], strides = [1, 1]} : vector<9x32xf32> to vector<1x32xf32>
    %16 = vector.shape_cast %15 : vector<1x32xf32> to vector<32xf32>
    %17 = vector.extract_strided_slice %4 {offsets = [6, 0], sizes = [1, 32], strides = [1, 1]} : vector<9x32xf32> to vector<1x32xf32>
    %18 = vector.shape_cast %17 : vector<1x32xf32> to vector<32xf32>
    %19 = vector.extract_strided_slice %4 {offsets = [7, 0], sizes = [1, 32], strides = [1, 1]} : vector<9x32xf32> to vector<1x32xf32>
    %20 = vector.shape_cast %19 : vector<1x32xf32> to vector<32xf32>
    %21 = vector.extract_strided_slice %4 {offsets = [8, 0], sizes = [1, 32], strides = [1, 1]} : vector<9x32xf32> to vector<1x32xf32>
    %22 = vector.shape_cast %21 : vector<1x32xf32> to vector<32xf32>
    %c0_3 = arith.constant 0 : index
    %c0_4 = arith.constant 0 : index
    %c0_5 = arith.constant 0 : index
    %23 = vector.load %arg7[%c0_3, %c0_4, %c0_5] : memref<1x1x64xf32, #tpu.memory_space<vmem>>, vector<1x1x64xf32>
    %24 = vector.shape_cast %23 : vector<1x1x64xf32> to vector<64xf32>
    %c0_6 = arith.constant 0 : index
    %c0_7 = arith.constant 0 : index
    %25 = vector.load %arg13[%c0_6, %c0_7] : memref<8x32xbf16, #tpu.memory_space<vmem>>, vector<8x32xbf16>
    %26 = arith.extf %25 : vector<8x32xbf16> to vector<8x32xf32>
    %c0_8 = arith.constant 0 : index
    %c0_9 = arith.constant 0 : index
    %c0_10 = arith.constant 0 : index
    %27 = vector.load %arg4[%c0_8, %c0_9, %c0_10] : memref<1x32x96xbf16, #tpu.memory_space<vmem>>, vector<1x32x96xbf16>
    %28 = vector.shape_cast %27 : vector<1x32x96xbf16> to vector<32x96xbf16>
    %cst = arith.constant dense<0.000000e+00> : vector<8x96xf32>
    %29 = tpu.matmul %25, %28, %cst {dimension_numbers = #tpu.dot_dimension_numbers<[1], [0], [0], [1], [0, 0, 1, 1], [], []>} : vector<8x32xbf16>, vector<32x96xbf16>, vector<8x96xf32> -> vector<8x96xf32>
    %30 = vector.extract_strided_slice %29 {offsets = [0, 0], sizes = [8, 32], strides = [1, 1]} : vector<8x96xf32> to vector<8x32xf32>
    %31 = vector.shape_cast %6 : vector<32xf32> to vector<1x32xf32>
    %32 = vector.broadcast %31 : vector<1x32xf32> to vector<8x32xf32>
    %33 = arith.addf %30, %32 : vector<8x32xf32>
    %cst_11 = arith.constant 0.353553385 : f32
    %34 = vector.broadcast %cst_11 : f32 to vector<8x32xf32>
    %35 = arith.mulf %33, %34 : vector<8x32xf32>
    %36 = vector.extract_strided_slice %29 {offsets = [0, 32], sizes = [8, 32], strides = [1, 1]} : vector<8x96xf32> to vector<8x32xf32>
    %37 = vector.shape_cast %8 : vector<32xf32> to vector<1x32xf32>
    %38 = vector.broadcast %37 : vector<1x32xf32> to vector<8x32xf32>
    %39 = arith.addf %36, %38 : vector<8x32xf32>
    %40 = vector.extract_strided_slice %29 {offsets = [0, 64], sizes = [8, 32], strides = [1, 1]} : vector<8x96xf32> to vector<8x32xf32>
    %41 = vector.shape_cast %10 : vector<32xf32> to vector<1x32xf32>
    %42 = vector.broadcast %41 : vector<1x32xf32> to vector<8x32xf32>
    %43 = arith.addf %40, %42 : vector<8x32xf32>
    %44 = arith.truncf %35 : vector<8x32xf32> to vector<8x32xbf16>
    %45 = vector.extract_strided_slice %44 {offsets = [0, 0], sizes = [8, 8], strides = [1, 1]} : vector<8x32xbf16> to vector<8x8xbf16>
    %46 = vector.extract_strided_slice %44 {offsets = [0, 8], sizes = [8, 8], strides = [1, 1]} : vector<8x32xbf16> to vector<8x8xbf16>
    %47 = vector.extract_strided_slice %44 {offsets = [0, 16], sizes = [8, 8], strides = [1, 1]} : vector<8x32xbf16> to vector<8x8xbf16>
    %48 = vector.extract_strided_slice %44 {offsets = [0, 24], sizes = [8, 8], strides = [1, 1]} : vector<8x32xbf16> to vector<8x8xbf16>
    %49 = vector.shape_cast %45 : vector<8x8xbf16> to vector<1x8x8xbf16>
    %50 = vector.shape_cast %46 : vector<8x8xbf16> to vector<1x8x8xbf16>
    %51 = vector.shape_cast %47 : vector<8x8xbf16> to vector<1x8x8xbf16>
    %52 = vector.shape_cast %48 : vector<8x8xbf16> to vector<1x8x8xbf16>
    %53 = tpu.concatenate %49, %50, %51, %52 in 0 : vector<1x8x8xbf16>, vector<1x8x8xbf16>, vector<1x8x8xbf16>, vector<1x8x8xbf16> -> vector<4x8x8xbf16>
    %54 = arith.truncf %39 : vector<8x32xf32> to vector<8x32xbf16>
    %55 = vector.extract_strided_slice %54 {offsets = [0, 0], sizes = [8, 8], strides = [1, 1]} : vector<8x32xbf16> to vector<8x8xbf16>
    %56 = vector.extract_strided_slice %54 {offsets = [0, 8], sizes = [8, 8], strides = [1, 1]} : vector<8x32xbf16> to vector<8x8xbf16>
    %57 = vector.extract_strided_slice %54 {offsets = [0, 16], sizes = [8, 8], strides = [1, 1]} : vector<8x32xbf16> to vector<8x8xbf16>
    %58 = vector.extract_strided_slice %54 {offsets = [0, 24], sizes = [8, 8], strides = [1, 1]} : vector<8x32xbf16> to vector<8x8xbf16>
    %59 = vector.shape_cast %55 : vector<8x8xbf16> to vector<1x8x8xbf16>
    %60 = vector.shape_cast %56 : vector<8x8xbf16> to vector<1x8x8xbf16>
    %61 = vector.shape_cast %57 : vector<8x8xbf16> to vector<1x8x8xbf16>
    %62 = vector.shape_cast %58 : vector<8x8xbf16> to vector<1x8x8xbf16>
    %63 = tpu.concatenate %59, %60, %61, %62 in 0 : vector<1x8x8xbf16>, vector<1x8x8xbf16>, vector<1x8x8xbf16>, vector<1x8x8xbf16> -> vector<4x8x8xbf16>
    %64 = arith.truncf %43 : vector<8x32xf32> to vector<8x32xbf16>
    %65 = vector.extract_strided_slice %64 {offsets = [0, 0], sizes = [8, 8], strides = [1, 1]} : vector<8x32xbf16> to vector<8x8xbf16>
    %66 = vector.extract_strided_slice %64 {offsets = [0, 8], sizes = [8, 8], strides = [1, 1]} : vector<8x32xbf16> to vector<8x8xbf16>
    %67 = vector.extract_strided_slice %64 {offsets = [0, 16], sizes = [8, 8], strides = [1, 1]} : vector<8x32xbf16> to vector<8x8xbf16>
    %68 = vector.extract_strided_slice %64 {offsets = [0, 24], sizes = [8, 8], strides = [1, 1]} : vector<8x32xbf16> to vector<8x8xbf16>
    %69 = vector.shape_cast %65 : vector<8x8xbf16> to vector<1x8x8xbf16>
    %70 = vector.shape_cast %66 : vector<8x8xbf16> to vector<1x8x8xbf16>
    %71 = vector.shape_cast %67 : vector<8x8xbf16> to vector<1x8x8xbf16>
    %72 = vector.shape_cast %68 : vector<8x8xbf16> to vector<1x8x8xbf16>
    %73 = tpu.concatenate %69, %70, %71, %72 in 0 : vector<1x8x8xbf16>, vector<1x8x8xbf16>, vector<1x8x8xbf16>, vector<1x8x8xbf16> -> vector<4x8x8xbf16>
    "tpu.trace_start"() <{level = 10 : i32, message = "hqd,hkd->hqk"}> : () -> ()
    %cst_12 = arith.constant dense<0.000000e+00> : vector<4x8x8xf32>
    %74 = tpu.matmul %53, %63, %cst_12 {dimension_numbers = #tpu.dot_dimension_numbers<[2], [2], [1], [1], [0, 0, 0, 1, 1, 1], [0], [0]>} : vector<4x8x8xbf16>, vector<4x8x8xbf16>, vector<4x8x8xf32> -> vector<4x8x8xf32>
    "tpu.trace_stop"() : () -> ()
    %c0_13 = arith.constant 0 : index
    %c0_14 = arith.constant 0 : index
    %c0_15 = arith.constant 0 : index
    %75 = vector.load %arg3[%c0_13, %c0_14, %c0_15] : memref<1x1x8xf32, #tpu.memory_space<vmem>>, vector<1x1x8xf32>
    %76 = vector.broadcast %75 : vector<1x1x8xf32> to vector<4x8x8xf32>
    %77 = arith.addf %74, %76 : vector<4x8x8xf32>
    %cst_16 = arith.constant dense<0xFF800000> : vector<4x8xf32>
    %78 = vector.multi_reduction <maximumf>, %77, %cst_16 [2] : vector<4x8x8xf32> to vector<4x8xf32>
    %79 = vector.shape_cast %78 : vector<4x8xf32> to vector<4x8x1xf32>
    %80 = vector.broadcast %79 : vector<4x8x1xf32> to vector<4x8x8xf32>
    %81 = arith.subf %77, %80 : vector<4x8x8xf32>
    %82 = math.exp %81 : vector<4x8x8xf32>
    %cst_17 = arith.constant dense<0.000000e+00> : vector<4x8xf32>
    %83 = vector.multi_reduction <add>, %82, %cst_17 [2] : vector<4x8x8xf32> to vector<4x8xf32>
    %84 = vector.shape_cast %83 : vector<4x8xf32> to vector<4x8x1xf32>
    %85 = tpu.reciprocal %84 {approx = true} : vector<4x8x1xf32> -> vector<4x8x1xf32>
    %86 = vector.broadcast %85 : vector<4x8x1xf32> to vector<4x8x8xf32>
    %87 = arith.mulf %82, %86 : vector<4x8x8xf32>
    %88 = arith.truncf %87 : vector<4x8x8xf32> to vector<4x8x8xbf16>
    "tpu.trace_start"() <{level = 10 : i32, message = "hqk,hkd->hqd"}> : () -> ()
    %cst_18 = arith.constant dense<0.000000e+00> : vector<4x8x8xf32>
    %89 = tpu.matmul %88, %73, %cst_18 {dimension_numbers = #tpu.dot_dimension_numbers<[2], [1], [1], [2], [0, 0, 0, 1, 1, 2], [0], [0]>} : vector<4x8x8xbf16>, vector<4x8x8xbf16>, vector<4x8x8xf32> -> vector<4x8x8xf32>
    "tpu.trace_stop"() : () -> ()
    %90 = vector.extract_strided_slice %89 {offsets = [0, 0, 0], sizes = [1, 8, 8], strides = [1, 1, 1]} : vector<4x8x8xf32> to vector<1x8x8xf32>
    %91 = vector.shape_cast %90 : vector<1x8x8xf32> to vector<8x8xf32>
    %92 = vector.extract_strided_slice %89 {offsets = [1, 0, 0], sizes = [1, 8, 8], strides = [1, 1, 1]} : vector<4x8x8xf32> to vector<1x8x8xf32>
    %93 = vector.shape_cast %92 : vector<1x8x8xf32> to vector<8x8xf32>
    %94 = vector.extract_strided_slice %89 {offsets = [2, 0, 0], sizes = [1, 8, 8], strides = [1, 1, 1]} : vector<4x8x8xf32> to vector<1x8x8xf32>
    %95 = vector.shape_cast %94 : vector<1x8x8xf32> to vector<8x8xf32>
    %96 = vector.extract_strided_slice %89 {offsets = [3, 0, 0], sizes = [1, 8, 8], strides = [1, 1, 1]} : vector<4x8x8xf32> to vector<1x8x8xf32>
    %97 = vector.shape_cast %96 : vector<1x8x8xf32> to vector<8x8xf32>
    %98 = tpu.concatenate %91, %93, %95, %97 in 1 : vector<8x8xf32>, vector<8x8xf32>, vector<8x8xf32>, vector<8x8xf32> -> vector<8x32xf32>
    %99 = arith.truncf %98 : vector<8x32xf32> to vector<8x32xbf16>
    %c0_19 = arith.constant 0 : index
    %c0_20 = arith.constant 0 : index
    %c0_21 = arith.constant 0 : index
    %100 = vector.load %arg5[%c0_19, %c0_20, %c0_21] : memref<1x32x32xbf16, #tpu.memory_space<vmem>>, vector<1x32x32xbf16>
    %101 = vector.shape_cast %100 : vector<1x32x32xbf16> to vector<32x32xbf16>
    %cst_22 = arith.constant dense<0.000000e+00> : vector<8x32xf32>
    %102 = tpu.matmul %99, %101, %cst_22 {dimension_numbers = #tpu.dot_dimension_numbers<[1], [0], [0], [1], [0, 0, 1, 1], [], []>} : vector<8x32xbf16>, vector<32x32xbf16>, vector<8x32xf32> -> vector<8x32xf32>
    %103 = vector.shape_cast %12 : vector<32xf32> to vector<1x32xf32>
    %104 = vector.broadcast %103 : vector<1x32xf32> to vector<8x32xf32>
    %105 = arith.addf %102, %104 : vector<8x32xf32>
    %106 = arith.addf %26, %105 : vector<8x32xf32>
    %cst_23 = arith.constant dense<0.000000e+00> : vector<8xf32>
    %107 = vector.multi_reduction <add>, %106, %cst_23 [1] : vector<8x32xf32> to vector<8xf32>
    %108 = vector.shape_cast %107 : vector<8xf32> to vector<8x1xf32>
    %cst_24 = arith.constant 3.200000e+01 : f32
    %109 = vector.broadcast %cst_24 : f32 to vector<8x1xf32>
    %110 = arith.divf %108, %109 : vector<8x1xf32>
    %111 = vector.broadcast %110 : vector<8x1xf32> to vector<8x32xf32>
    %112 = arith.subf %106, %111 : vector<8x32xf32>
    %113 = arith.mulf %112, %112 : vector<8x32xf32>
    %cst_25 = arith.constant dense<0.000000e+00> : vector<8xf32>
    %114 = vector.multi_reduction <add>, %113, %cst_25 [1] : vector<8x32xf32> to vector<8xf32>
    %115 = vector.shape_cast %114 : vector<8xf32> to vector<8x1xf32>
    %cst_26 = arith.constant 3.200000e+01 : f32
    %116 = vector.broadcast %cst_26 : f32 to vector<8x1xf32>
    %117 = arith.divf %115, %116 : vector<8x1xf32>
    %118 = vector.broadcast %110 : vector<8x1xf32> to vector<8x32xf32>
    %119 = arith.subf %106, %118 : vector<8x32xf32>
    %cst_27 = arith.constant 9.99999996E-13 : f32
    %120 = vector.broadcast %cst_27 : f32 to vector<8x1xf32>
    %121 = arith.addf %117, %120 : vector<8x1xf32>
    %122 = math.rsqrt %121 : vector<8x1xf32>
    %123 = vector.broadcast %122 : vector<8x1xf32> to vector<8x32xf32>
    %124 = arith.mulf %119, %123 : vector<8x32xf32>
    %125 = vector.shape_cast %14 : vector<32xf32> to vector<1x32xf32>
    %126 = vector.broadcast %125 : vector<1x32xf32> to vector<8x32xf32>
    %127 = arith.mulf %124, %126 : vector<8x32xf32>
    %128 = vector.shape_cast %16 : vector<32xf32> to vector<1x32xf32>
    %129 = vector.broadcast %128 : vector<1x32xf32> to vector<8x32xf32>
    %130 = arith.addf %127, %129 : vector<8x32xf32>
    %131 = arith.truncf %130 : vector<8x32xf32> to vector<8x32xbf16>
    %c0_28 = arith.constant 0 : index
    %c0_29 = arith.constant 0 : index
    %c0_30 = arith.constant 0 : index
    %132 = vector.load %arg6[%c0_28, %c0_29, %c0_30] : memref<1x32x64xbf16, #tpu.memory_space<vmem>>, vector<1x32x64xbf16>
    %133 = vector.shape_cast %132 : vector<1x32x64xbf16> to vector<32x64xbf16>
    %cst_31 = arith.constant dense<0.000000e+00> : vector<8x64xf32>
    %134 = tpu.matmul %131, %133, %cst_31 {dimension_numbers = #tpu.dot_dimension_numbers<[1], [0], [0], [1], [0, 0, 1, 1], [], []>} : vector<8x32xbf16>, vector<32x64xbf16>, vector<8x64xf32> -> vector<8x64xf32>
    %135 = vector.shape_cast %24 : vector<64xf32> to vector<1x64xf32>
    %136 = vector.broadcast %135 : vector<1x64xf32> to vector<8x64xf32>
    %137 = arith.addf %134, %136 : vector<8x64xf32>
    %cst_32 = arith.constant 5.000000e-01 : f32
    %138 = vector.broadcast %cst_32 : f32 to vector<8x64xf32>
    %139 = arith.mulf %138, %137 : vector<8x64xf32>
    %cst_33 = arith.constant 4.471500e-02 : f32
    %140 = vector.broadcast %cst_33 : f32 to vector<8x64xf32>
    %141 = arith.mulf %140, %137 : vector<8x64xf32>
    %142 = arith.mulf %141, %137 : vector<8x64xf32>
    %143 = arith.mulf %142, %137 : vector<8x64xf32>
    %144 = arith.addf %137, %143 : vector<8x64xf32>
    %cst_34 = arith.constant 0.797884583 : f32
    %145 = vector.broadcast %cst_34 : f32 to vector<8x64xf32>
    %146 = arith.mulf %145, %144 : vector<8x64xf32>
    %147 = math.tanh %146 : vector<8x64xf32>
    %cst_35 = arith.constant 1.000000e+00 : f32
    %148 = vector.broadcast %cst_35 : f32 to vector<8x64xf32>
    %149 = arith.addf %148, %147 : vector<8x64xf32>
    %150 = arith.mulf %139, %149 : vector<8x64xf32>
    %151 = arith.truncf %150 : vector<8x64xf32> to vector<8x64xbf16>
    %c0_36 = arith.constant 0 : index
    %c0_37 = arith.constant 0 : index
    %c0_38 = arith.constant 0 : index
    %152 = vector.load %arg8[%c0_36, %c0_37, %c0_38] : memref<1x64x32xbf16, #tpu.memory_space<vmem>>, vector<1x64x32xbf16>
    %153 = vector.shape_cast %152 : vector<1x64x32xbf16> to vector<64x32xbf16>
    %cst_39 = arith.constant dense<0.000000e+00> : vector<8x32xf32>
    %154 = tpu.matmul %151, %153, %cst_39 {dimension_numbers = #tpu.dot_dimension_numbers<[1], [0], [0], [1], [0, 0, 1, 1], [], []>} : vector<8x64xbf16>, vector<64x32xbf16>, vector<8x32xf32> -> vector<8x32xf32>
    %155 = vector.shape_cast %18 : vector<32xf32> to vector<1x32xf32>
    %156 = vector.broadcast %155 : vector<1x32xf32> to vector<8x32xf32>
    %157 = arith.addf %154, %156 : vector<8x32xf32>
    %158 = arith.addf %130, %157 : vector<8x32xf32>
    %cst_40 = arith.constant dense<0.000000e+00> : vector<8xf32>
    %159 = vector.multi_reduction <add>, %158, %cst_40 [1] : vector<8x32xf32> to vector<8xf32>
    %160 = vector.shape_cast %159 : vector<8xf32> to vector<8x1xf32>
    %cst_41 = arith.constant 3.200000e+01 : f32
    %161 = vector.broadcast %cst_41 : f32 to vector<8x1xf32>
    %162 = arith.divf %160, %161 : vector<8x1xf32>
    %163 = vector.broadcast %162 : vector<8x1xf32> to vector<8x32xf32>
    %164 = arith.subf %158, %163 : vector<8x32xf32>
    %165 = arith.mulf %164, %164 : vector<8x32xf32>
    %cst_42 = arith.constant dense<0.000000e+00> : vector<8xf32>
    %166 = vector.multi_reduction <add>, %165, %cst_42 [1] : vector<8x32xf32> to vector<8xf32>
    %167 = vector.shape_cast %166 : vector<8xf32> to vector<8x1xf32>
    %cst_43 = arith.constant 3.200000e+01 : f32
    %168 = vector.broadcast %cst_43 : f32 to vector<8x1xf32>
    %169 = arith.divf %167, %168 : vector<8x1xf32>
    %170 = vector.broadcast %162 : vector<8x1xf32> to vector<8x32xf32>
    %171 = arith.subf %158, %170 : vector<8x32xf32>
    %cst_44 = arith.constant 9.99999996E-13 : f32
    %172 = vector.broadcast %cst_44 : f32 to vector<8x1xf32>
    %173 = arith.addf %169, %172 : vector<8x1xf32>
    %174 = math.rsqrt %173 : vector<8x1xf32>
    %175 = vector.broadcast %174 : vector<8x1xf32> to vector<8x32xf32>
    %176 = arith.mulf %171, %175 : vector<8x32xf32>
    %177 = vector.shape_cast %20 : vector<32xf32> to vector<1x32xf32>
    %178 = vector.broadcast %177 : vector<1x32xf32> to vector<8x32xf32>
    %179 = arith.mulf %176, %178 : vector<8x32xf32>
    %180 = vector.shape_cast %22 : vector<32xf32> to vector<1x32xf32>
    %181 = vector.broadcast %180 : vector<1x32xf32> to vector<8x32xf32>
    %182 = arith.addf %179, %181 : vector<8x32xf32>
    %183 = arith.truncf %182 : vector<8x32xf32> to vector<8x32xbf16>
    %c0_45 = arith.constant 0 : index
    %c0_46 = arith.constant 0 : index
    %184 = vector.load %arg13[%c0_45, %c0_46] : memref<8x32xbf16, #tpu.memory_space<vmem>>, vector<8x32xbf16>
    tpu.vector_store %arg13[%c0_45, %c0_46], %183 {strides = array<i32>} : memref<8x32xbf16, #tpu.memory_space<vmem>>, vector<8x32xbf16>,
    %c1_i32 = arith.constant 1 : i32
    %185 = arith.cmpi eq, %arg1, %c1_i32 : i32
    %186 = arith.extui %185 : i1 to i32
    %c0_i32_47 = arith.constant 0 : i32
    %187 = arith.cmpi ne, %186, %c0_i32_47 : i32
    scf.if %187 {
      %188 = vector.extract_strided_slice %182 {offsets = [0, 0], sizes = [1, 32], strides = [1, 1]} : vector<8x32xf32> to vector<1x32xf32>
      %189 = arith.truncf %188 : vector<1x32xf32> to vector<1x32xbf16>
      %c0_48 = arith.constant 0 : index
      %c0_49 = arith.constant 0 : index
      %190 = vector.load %arg10[%c0_48, %c0_49] : memref<32x128xbf16, #tpu.memory_space<vmem>>, vector<32x128xbf16>
      %cst_50 = arith.constant dense<0.000000e+00> : vector<1x128xf32>
      %191 = tpu.matmul %189, %190, %cst_50 {dimension_numbers = #tpu.dot_dimension_numbers<[1], [0], [0], [1], [0, 0, 1, 1], [], []>} : vector<1x32xbf16>, vector<32x128xbf16>, vector<1x128xf32> -> vector<1x128xf32>
      %c0_51 = arith.constant 0 : index
      %c0_52 = arith.constant 0 : index
      %192 = vector.load %arg11[%c0_51, %c0_52] : memref<1x128xf32, #tpu.memory_space<vmem>>, vector<1x128xf32>
      %193 = arith.addf %191, %192 : vector<1x128xf32>
      %194 = vector.shape_cast %193 : vector<1x128xf32> to vector<1x1x128xf32>
      %c0_53 = arith.constant 0 : index
      %c0_54 = arith.constant 0 : index
      %c0_55 = arith.constant 0 : index
      %195 = vector.load %arg12[%c0_53, %c0_54, %c0_55] : memref<1x1x128xf32, #tpu.memory_space<vmem>>, vector<1x1x128xf32>
      tpu.vector_store %arg12[%c0_53, %c0_54, %c0_55], %194 {strides = array<i32>} : memref<1x1x128xf32, #tpu.memory_space<vmem>>, vector<1x1x128xf32>,
    } else {
    }
    return
  }
  func.func @transform_0(%arg0: i32, %arg1: i32) -> (i32, i32, i32) {
    %c0_i32 = arith.constant 0 : i32
    %c0_i32_0 = arith.constant 0 : i32
    %c0_i32_1 = arith.constant 0 : i32
    return %arg0, %c0_i32, %c0_i32_0 : i32, i32, i32
  }
  func.func @transform_1(%arg0: i32, %arg1: i32) -> (i32, i32, i32) {
    %c0_i32 = arith.constant 0 : i32
    %c0_i32_0 = arith.constant 0 : i32
    %c0_i32_1 = arith.constant 0 : i32
    return %arg0, %c0_i32, %c0_i32_0 : i32, i32, i32
  }
  func.func @transform_2(%arg0: i32, %arg1: i32) -> (i32, i32, i32) {
    %c0_i32 = arith.constant 0 : i32
    %c0_i32_0 = arith.constant 0 : i32
    %c0_i32_1 = arith.constant 0 : i32
    return %arg1, %c0_i32, %c0_i32_0 : i32, i32, i32
  }
  func.func @transform_3(%arg0: i32, %arg1: i32) -> (i32, i32, i32) {
    %c0_i32 = arith.constant 0 : i32
    %c0_i32_0 = arith.constant 0 : i32
    %c0_i32_1 = arith.constant 0 : i32
    return %arg1, %c0_i32, %c0_i32_0 : i32, i32, i32
  }
  func.func @transform_4(%arg0: i32, %arg1: i32) -> (i32, i32, i32) {
    %c0_i32 = arith.constant 0 : i32
    %c0_i32_0 = arith.constant 0 : i32
    %c0_i32_1 = arith.constant 0 : i32
    return %arg1, %c0_i32, %c0_i32_0 : i32, i32, i32
  }
  func.func @transform_5(%arg0: i32, %arg1: i32) -> (i32, i32, i32) {
    %c0_i32 = arith.constant 0 : i32
    %c0_i32_0 = arith.constant 0 : i32
    %c0_i32_1 = arith.constant 0 : i32
    return %arg1, %c0_i32, %c0_i32_0 : i32, i32, i32
  }
  func.func @transform_6(%arg0: i32, %arg1: i32) -> (i32, i32, i32) {
    %c0_i32 = arith.constant 0 : i32
    %c0_i32_0 = arith.constant 0 : i32
    %c0_i32_1 = arith.constant 0 : i32
    return %arg1, %c0_i32, %c0_i32_0 : i32, i32, i32
  }
  func.func @transform_7(%arg0: i32, %arg1: i32) -> (i32, i32, i32) {
    %c0_i32 = arith.constant 0 : i32
    %c0_i32_0 = arith.constant 0 : i32
    %c0_i32_1 = arith.constant 0 : i32
    return %arg1, %c0_i32, %c0_i32_0 : i32, i32, i32
  }
  func.func @transform_8(%arg0: i32, %arg1: i32) -> (i32, i32) {
    %c0_i32 = arith.constant 0 : i32
    %c0_i32_0 = arith.constant 0 : i32
    %c0_i32_1 = arith.constant 0 : i32
    return %c0_i32, %c0_i32_0 : i32, i32
  }
  func.func @transform_9(%arg0: i32, %arg1: i32) -> (i32, i32) {
    %c0_i32 = arith.constant 0 : i32
    %c0_i32_0 = arith.constant 0 : i32
    %c0_i32_1 = arith.constant 0 : i32
    return %c0_i32, %c0_i32_0 : i32, i32
  }
  func.func @transform_10(%arg0: i32, %arg1: i32) -> (i32, i32, i32) {
    %c0_i32 = arith.constant 0 : i32
    %c0_i32_0 = arith.constant 0 : i32
    %c0_i32_1 = arith.constant 0 : i32
    return %arg0, %c0_i32, %c0_i32_0 : i32, i32, i32
  }
}

</mosaic_0001>

<llo_original>
// kernel: tpu_custom_call.1
$region0: #{tpu_custom_call.1}
  #allocation0 [shape = 'u32[]', space=smem, size = 0x4, offset = 0x4, fixed_abs, tag = 'smem constant byte address 0x4 - core index']
  #allocation1 [shape = 'u32[72,128]{1,0:T(1,128)}', space=vmem, size = 0x9000, scoped, tag = 'internal scratch']
  #allocation2 [shape = 'bf16[8,32]{1,0:T(8,128)(2,1)}', space=vmem, size = 0x800, scoped, tag = 'scratch operand']
  %s0 = inlined_call_operand.hbm [shape: bf16[2,8,32], index: 0, kind: input, shape index: {}]
  %s1 = inlined_call_operand.vmem [shape: f32[2,1,8], index: 1, kind: input, shape index: {}]
  %s2 = inlined_call_operand.vmem [shape: bf16[2,32,96], index: 2, kind: input, shape index: {}]
  %s3 = inlined_call_operand.vmem [shape: bf16[2,32,32], index: 3, kind: input, shape index: {}]
  %s4 = inlined_call_operand.vmem [shape: bf16[2,32,64], index: 4, kind: input, shape index: {}]
  %s5 = inlined_call_operand.vmem [shape: f32[2,1,64], index: 5, kind: input, shape index: {}]
  %s6 = inlined_call_operand.vmem [shape: bf16[2,64,32], index: 6, kind: input, shape index: {}]
  %s7 = inlined_call_operand.vmem [shape: f32[2,9,32], index: 7, kind: input, shape index: {}]
  %s8 = inlined_call_operand.vmem [shape: bf16[32,128], index: 8, kind: input, shape index: {}]
  %s9 = inlined_call_operand.vmem [shape: f32[1,128], index: 9, kind: input, shape index: {}]
  %s10 = inlined_call_operand.hbm [shape: f32[2,1,128], index: 10, kind: output, shape index: {}]
  %s11 = sld [smem:[#allocation0]]
  $region85: #{tpu_custom_call.1} parent=0
    _
  %s13 = ssub.s32 1, %s11
  %s14 = scalar_select 0, %s13, %s11
  $region1: #{tpu_custom_call.1} parent=0
    #allocation3 [shape = 'u8[4096]{0}', space=vmem, size = 0x1000, scoped, tag = 'input window, operand 0']
    #allocation4 [shape = 's32[2]{0}', space=sflag, size = 0x8, scoped, tag = 'scoped memory for tpu_custom_call.1']
    #allocation5 [shape = 's32[2]{0}', space=sflag, size = 0x8, scoped, tag = 'scoped memory for tpu_custom_call.1']
    #allocation6 [shape = 'u8[1024]{0}', space=vmem, size = 0x400, scoped, tag = 'output window, operand 0']
    %15 = vsyncpa [#allocation4], 0
    %s16 = scalar_lea.sflag [#allocation4], 1
    %17 = vsyncpa %s16, 0
    %18 = vsyncpa [#allocation5], 0
    %s19 = scalar_lea.sflag [#allocation5], 1
    %20 = vsyncpa %s19, 0
    loop: start=0, step=1, limit=6
    $region2: #{tpu_custom_call.1} parent=1 // loop_pre_header
      _
    $region3: #{tpu_custom_call.1} parent=1 // loop_header
      %s22 = sphi 0, %s26
      %p23 = scmp.ge.s32.totalorder %s22, 6
      %s29 = sphi 0, %s41
      %s30 = sphi 0, %s37
      %s31 = sphi 0, %s29
      %s32 = sphi 0, %s30
      %s33 = sphi 0, %s31
      %s34 = sphi 0, %s32
      %s44 = sphi 0, %s46
      %s47 = sphi 0, %s44
      %s48 = sphi 0, %s47
      %s64 = sphi 0, %s48
      %s70 = sphi 0, %s72
      %s73 = sphi 0, %s70
      %s74 = sphi 0, %s73
      %s90 = sphi 0, %s74
      %s96 = sphi 0, %s98
      %s99 = sphi 0, %s96
      %s100 = sphi 0, %s99
      %s116 = sphi 0, %s100
      %s122 = sphi 0, %s124
      %s125 = sphi 0, %s122
      %s126 = sphi 0, %s125
      %s142 = sphi 0, %s126
      %s148 = sphi 0, %s150
      %s151 = sphi 0, %s148
      %s152 = sphi 0, %s151
      %s168 = sphi 0, %s152
      %s174 = sphi 0, %s176
      %s177 = sphi 0, %s174
      %s178 = sphi 0, %s177
      %s194 = sphi 0, %s178
      %s200 = sphi 0, %s202
      %s203 = sphi 0, %s200
      %s204 = sphi 0, %s203
      %s220 = sphi 0, %s204
      %s226 = sphi 0, %s228
      %s229 = sphi 0, %s226
      %s230 = sphi 0, %s229
      %s246 = sphi 0, %s230
      %s250 = sphi 0, %s250
      %s252 = sphi 0, %s250
      %s253 = sphi 0, %s252
      %s267 = sphi 0, %s253
      %s271 = sphi 0, %s271
      %s273 = sphi 0, %s271
      %s274 = sphi 0, %s273
      %s288 = sphi 0, %s274
      %s294 = sphi 0, %s296
      %s297 = sphi 0, %s294
      %s298 = sphi 0, %s297
      %s314 = sphi 0, %s298
    $region4: #{tpu_custom_call.1} parent=1 // loop_header_branch
      %25 = sbr.rel (%p23) target = $region8
    $region5: #{tpu_custom_call.1} parent=1 // loop_body
      %s27 = ssub.s32 %s22, 1
      %s28 = ssub.s32 %s22, 2
      %s35 = sadd.s32 1, %s30
      %p36 = scmp.ge.s32.totalorder %s35, 2
      %s37 = scalar_select %p36, 0, %s35
      %s38 = sadd.s32 1, %s29
      %s39 = scalar_select %p36, %s38, %s29
      %p40 = scmp.ge.s32.totalorder %s39, 2
      %s41 = scalar_select %p40, 0, %s39
      %s42 = ssub.s32 %s29, %s41
      %p43 = scmp.eq.s32.totalorder %s42, 0
      %s45 = sadd.s32 %s44, 1
      %s46 = scalar_select %p43, %s44, %s45
      %p49 = pneg %p43
      %p50 = scmp.eq.s32.totalorder %s22, 3
      %p51 = por %p49, %p50
      %p52 = scmp.ne.s32.totalorder %s44, %s47
      %p53 = scmp.eq.s32.totalorder %s22, 0
      %p54 = por %p52, %p53
      %p55 = scmp.ne.s32.totalorder %s44, %s47
      %p56 = scmp.eq.s32.totalorder %s27, 3
      %p57 = por %p55, %p56
      %p58 = scmp.ne.s32.totalorder %s47, %s48
      %p59 = scmp.eq.s32.totalorder %s27, 0
      %p60 = por %p58, %p59
      %p61 = scmp.ne.s32.totalorder %s47, %s48
      %p62 = scmp.eq.s32.totalorder %s28, 3
      %p63 = por %p61, %p62
      %p65 = scmp.ne.s32.totalorder %s48, %s64
      %p66 = scmp.eq.s32.totalorder %s28, 0
      %p67 = por %p65, %p66
      %s68 = ssub.s32 %s29, %s41
      %p69 = scmp.eq.s32.totalorder %s68, 0
      %s71 = sadd.s32 %s70, 1
      %s72 = scalar_select %p69, %s70, %s71
      %p75 = pneg %p69
      %p76 = scmp.eq.s32.totalorder %s22, 3
      %p77 = por %p75, %p76
      %p78 = scmp.ne.s32.totalorder %s70, %s73
      %p79 = scmp.eq.s32.totalorder %s22, 0
      %p80 = por %p78, %p79
      %p81 = scmp.ne.s32.totalorder %s70, %s73
      %p82 = scmp.eq.s32.totalorder %s27, 3
      %p83 = por %p81, %p82
      %p84 = scmp.ne.s32.totalorder %s73, %s74
      %p85 = scmp.eq.s32.totalorder %s27, 0
      %p86 = por %p84, %p85
      %p87 = scmp.ne.s32.totalorder %s73, %s74
      %p88 = scmp.eq.s32.totalorder %s28, 3
      %p89 = por %p87, %p88
      %p91 = scmp.ne.s32.totalorder %s74, %s90
      %p92 = scmp.eq.s32.totalorder %s28, 0
      %p93 = por %p91, %p92
      %s94 = ssub.s32 %s30, %s37
      %p95 = scmp.eq.s32.totalorder %s94, 0
      %s97 = sadd.s32 %s96, 1
      %s98 = scalar_select %p95, %s96, %s97
      %p101 = pneg %p95
      %p102 = scmp.eq.s32.totalorder %s22, 3
      %p103 = por %p101, %p102
      %p104 = scmp.ne.s32.totalorder %s96, %s99
      %p105 = scmp.eq.s32.totalorder %s22, 0
      %p106 = por %p104, %p105
      %p107 = scmp.ne.s32.totalorder %s96, %s99
      %p108 = scmp.eq.s32.totalorder %s27, 3
      %p109 = por %p107, %p108
      %p110 = scmp.ne.s32.totalorder %s99, %s100
      %p111 = scmp.eq.s32.totalorder %s27, 0
      %p112 = por %p110, %p111
      %p113 = scmp.ne.s32.totalorder %s99, %s100
      %p114 = scmp.eq.s32.totalorder %s28, 3
      %p115 = por %p113, %p114
      %p117 = scmp.ne.s32.totalorder %s100, %s116
      %p118 = scmp.eq.s32.totalorder %s28, 0
      %p119 = por %p117, %p118
      %s120 = ssub.s32 %s30, %s37
      %p121 = scmp.eq.s32.totalorder %s120, 0
      %s123 = sadd.s32 %s122, 1
      %s124 = scalar_select %p121, %s122, %s123
      %p127 = pneg %p121
      %p128 = scmp.eq.s32.totalorder %s22, 3
      %p129 = por %p127, %p128
      %p130 = scmp.ne.s32.totalorder %s122, %s125
      %p131 = scmp.eq.s32.totalorder %s22, 0
      %p132 = por %p130, %p131
      %p133 = scmp.ne.s32.totalorder %s122, %s125
      %p134 = scmp.eq.s32.totalorder %s27, 3
      %p135 = por %p133, %p134
      %p136 = scmp.ne.s32.totalorder %s125, %s126
      %p137 = scmp.eq.s32.totalorder %s27, 0
      %p138 = por %p136, %p137
      %p139 = scmp.ne.s32.totalorder %s125, %s126
      %p140 = scmp.eq.s32.totalorder %s28, 3
      %p141 = por %p139, %p140
      %p143 = scmp.ne.s32.totalorder %s126, %s142
      %p144 = scmp.eq.s32.totalorder %s28, 0
      %p145 = por %p143, %p144
      %s146 = ssub.s32 %s30, %s37
      %p147 = scmp.eq.s32.totalorder %s146, 0
      %s149 = sadd.s32 %s148, 1
      %s150 = scalar_select %p147, %s148, %s149
      %p153 = pneg %p147
      %p154 = scmp.eq.s32.totalorder %s22, 3
      %p155 = por %p153, %p154
      %p156 = scmp.ne.s32.totalorder %s148, %s151
      %p157 = scmp.eq.s32.totalorder %s22, 0
      %p158 = por %p156, %p157
      %p159 = scmp.ne.s32.totalorder %s148, %s151
      %p160 = scmp.eq.s32.totalorder %s27, 3
      %p161 = por %p159, %p160
      %p162 = scmp.ne.s32.totalorder %s151, %s152
      %p163 = scmp.eq.s32.totalorder %s27, 0
      %p164 = por %p162, %p163
      %p165 = scmp.ne.s32.totalorder %s151, %s152
      %p166 = scmp.eq.s32.totalorder %s28, 3
      %p167 = por %p165, %p166
      %p169 = scmp.ne.s32.totalorder %s152, %s168
      %p170 = scmp.eq.s32.totalorder %s28, 0
      %p171 = por %p169, %p170
      %s172 = ssub.s32 %s30, %s37
      %p173 = scmp.eq.s32.totalorder %s172, 0
      %s175 = sadd.s32 %s174, 1
      %s176 = scalar_select %p173, %s174, %s175
      %p179 = pneg %p173
      %p180 = scmp.eq.s32.totalorder %s22, 3
      %p181 = por %p179, %p180
      %p182 = scmp.ne.s32.totalorder %s174, %s177
      %p183 = scmp.eq.s32.totalorder %s22, 0
      %p184 = por %p182, %p183
      %p185 = scmp.ne.s32.totalorder %s174, %s177
      %p186 = scmp.eq.s32.totalorder %s27, 3
      %p187 = por %p185, %p186
      %p188 = scmp.ne.s32.totalorder %s177, %s178
      %p189 = scmp.eq.s32.totalorder %s27, 0
      %p190 = por %p188, %p189
      %p191 = scmp.ne.s32.totalorder %s177, %s178
      %p192 = scmp.eq.s32.totalorder %s28, 3
      %p193 = por %p191, %p192
      %p195 = scmp.ne.s32.totalorder %s178, %s194
      %p196 = scmp.eq.s32.totalorder %s28, 0
      %p197 = por %p195, %p196
      %s198 = ssub.s32 %s30, %s37
      %p199 = scmp.eq.s32.totalorder %s198, 0
      %s201 = sadd.s32 %s200, 1
      %s202 = scalar_select %p199, %s200, %s201
      %p205 = pneg %p199
      %p206 = scmp.eq.s32.totalorder %s22, 3
      %p207 = por %p205, %p206
      %p208 = scmp.ne.s32.totalorder %s200, %s203
      %p209 = scmp.eq.s32.totalorder %s22, 0
      %p210 = por %p208, %p209
      %p211 = scmp.ne.s32.totalorder %s200, %s203
      %p212 = scmp.eq.s32.totalorder %s27, 3
      %p213 = por %p211, %p212
      %p214 = scmp.ne.s32.totalorder %s203, %s204
      %p215 = scmp.eq.s32.totalorder %s27, 0
      %p216 = por %p214, %p215
      %p217 = scmp.ne.s32.totalorder %s203, %s204
      %p218 = scmp.eq.s32.totalorder %s28, 3
      %p219 = por %p217, %p218
      %p221 = scmp.ne.s32.totalorder %s204, %s220
      %p222 = scmp.eq.s32.totalorder %s28, 0
      %p223 = por %p221, %p222
      %s224 = ssub.s32 %s30, %s37
      %p225 = scmp.eq.s32.totalorder %s224, 0
      %s227 = sadd.s32 %s226, 1
      %s228 = scalar_select %p225, %s226, %s227
      %p231 = pneg %p225
      %p232 = scmp.eq.s32.totalorder %s22, 3
      %p233 = por %p231, %p232
      %p234 = scmp.ne.s32.totalorder %s226, %s229
      %p235 = scmp.eq.s32.totalorder %s22, 0
      %p236 = por %p234, %p235
      %p237 = scmp.ne.s32.totalorder %s226, %s229
      %p238 = scmp.eq.s32.totalorder %s27, 3
      %p239 = por %p237, %p238
      %p240 = scmp.ne.s32.totalorder %s229, %s230
      %p241 = scmp.eq.s32.totalorder %s27, 0
      %p242 = por %p240, %p241
      %p243 = scmp.ne.s32.totalorder %s229, %s230
      %p244 = scmp.eq.s32.totalorder %s28, 3
      %p245 = por %p243, %p244
      %p247 = scmp.ne.s32.totalorder %s230, %s246
      %p248 = scmp.eq.s32.totalorder %s28, 0
      %p249 = por %p247, %p248
      %s251 = sadd.s32 %s250, 1
      %p254 = scmp.eq.s32.totalorder %s22, 3
      %p255 = scmp.ne.s32.totalorder %s250, %s252
      %p256 = scmp.eq.s32.totalorder %s22, 0
      %p257 = por %p255, %p256
      %p258 = scmp.ne.s32.totalorder %s250, %s252
      %p259 = scmp.eq.s32.totalorder %s27, 3
      %p260 = por %p258, %p259
      %p261 = scmp.ne.s32.totalorder %s252, %s253
      %p262 = scmp.eq.s32.totalorder %s27, 0
      %p263 = por %p261, %p262
      %p264 = scmp.ne.s32.totalorder %s252, %s253
      %p265 = scmp.eq.s32.totalorder %s28, 3
      %p266 = por %p264, %p265
      %p268 = scmp.ne.s32.totalorder %s253, %s267
      %p269 = scmp.eq.s32.totalorder %s28, 0
      %p270 = por %p268, %p269
      %s272 = sadd.s32 %s271, 1
      %p275 = scmp.eq.s32.totalorder %s22, 3
      %p276 = scmp.ne.s32.totalorder %s271, %s273
      %p277 = scmp.eq.s32.totalorder %s22, 0
      %p278 = por %p276, %p277
      %p279 = scmp.ne.s32.totalorder %s271, %s273
      %p280 = scmp.eq.s32.totalorder %s27, 3
      %p281 = por %p279, %p280
      %p282 = scmp.ne.s32.totalorder %s273, %s274
      %p283 = scmp.eq.s32.totalorder %s27, 0
      %p284 = por %p282, %p283
      %p285 = scmp.ne.s32.totalorder %s273, %s274
      %p286 = scmp.eq.s32.totalorder %s28, 3
      %p287 = por %p285, %p286
      %p289 = scmp.ne.s32.totalorder %s274, %s288
      %p290 = scmp.eq.s32.totalorder %s28, 0
      %p291 = por %p289, %p290
      %s292 = ssub.s32 %s29, %s41
      %p293 = scmp.eq.s32.totalorder %s292, 0
      %s295 = sadd.s32 %s294, 1
      %s296 = scalar_select %p293, %s294, %s295
      %p299 = pneg %p293
      %p300 = scmp.eq.s32.totalorder %s22, 3
      %p301 = por %p299, %p300
      %p302 = scmp.ne.s32.totalorder %s294, %s297
      %p303 = scmp.eq.s32.totalorder %s22, 0
      %p304 = por %p302, %p303
      %p305 = scmp.ne.s32.totalorder %s294, %s297
      %p306 = scmp.eq.s32.totalorder %s27, 3
      %p307 = por %p305, %p306
      %p308 = scmp.ne.s32.totalorder %s297, %s298
      %p309 = scmp.eq.s32.totalorder %s27, 0
      %p310 = por %p308, %p309
      %p311 = scmp.ne.s32.totalorder %s297, %s298
      %p312 = scmp.eq.s32.totalorder %s28, 3
      %p313 = por %p311, %p312
      %p315 = scmp.ne.s32.totalorder %s298, %s314
      %p316 = scmp.eq.s32.totalorder %s28, 0
      %p317 = por %p315, %p316
      %p318 = scmp.le.s32.totalorder 1, %s22
      %p319 = scmp.lt.s32.totalorder %s22, 5
      %p320 = pnand %p318, %p319
      %p321 = pneg %p320
      // Predicated region
      $region9: #{tpu_custom_call.1} parent=5 // pred_check
        _
      $region10: #{tpu_custom_call.1} parent=5 // pred_check_branch
        %323 = sbr.rel (%p320) target = $region12
      $region11: #{tpu_custom_call.1} parent=5 // pred_region
        %s324 = ssub.s32 %s22, 1
        // Predicated region
        $region13: #{tpu_custom_call.1} parent=11 // pred_check
          %p325 = pneg %p263
        $region14: #{tpu_custom_call.1} parent=11 // pred_check_branch
          %327 = sbr.rel (%p325) target = $region16
        $region15: #{tpu_custom_call.1} parent=11 // pred_region
          _
        $region16: #{tpu_custom_call.1} parent=11 // pred_fallthru
          _
        // Predicated region
        $region17: #{tpu_custom_call.1} parent=11 // pred_check
          %p328 = pneg %p284
        $region18: #{tpu_custom_call.1} parent=11 // pred_check_branch
          %330 = sbr.rel (%p328) target = $region20
        $region19: #{tpu_custom_call.1} parent=11 // pred_region
          _
        $region20: #{tpu_custom_call.1} parent=11 // pred_fallthru
          _
      $region12: #{tpu_custom_call.1} parent=5 // pred_fallthru
        _
      %p331 = scmp.lt.s32.totalorder %s22, 4
      // Predicated region
      $region21: #{tpu_custom_call.1} parent=5 // pred_check
        %p332 = pneg %p331
      $region22: #{tpu_custom_call.1} parent=5 // pred_check_branch
        %334 = sbr.rel (%p332) target = $region24
      $region23: #{tpu_custom_call.1} parent=5 // pred_region
        // Predicated region
        $region25: #{tpu_custom_call.1} parent=23 // pred_check
          %p335 = pneg %p54
        $region26: #{tpu_custom_call.1} parent=23 // pred_check_branch
          %337 = sbr.rel (%p335) target = $region28
        $region27: #{tpu_custom_call.1} parent=23 // pred_region
          %s338 = sand.u32 %s44, 1
          %s339 = scalar_lea.sflag [#allocation4], %s338
          %s340 = sand.u32 %s44, 1
          %s341 = smul.addr %s340, 4
          %s342 = scalar_lea.vmem [#allocation3], %s341
          %344 = vsyncadd %s339, 0
          %s345 = smul.addr %s29, 4
          %s346 = scalar_lea.hbm %s0, %s345
          %s348 = sshll.u32 %s346, 4
          %s349 = int_to_ptr.hbm [resolvable:$true] %s348
          %s350 = sshll.u32 %s342, 4
          %s351 = int_to_ptr.vmem [resolvable:$true] %s350
          %353 = dma.hbm_to_vmem [thread:$0]  %s349, 64, %s351, %s339
        $region28: #{tpu_custom_call.1} parent=23 // pred_fallthru
          _
        // Predicated region
        $region29: #{tpu_custom_call.1} parent=23 // pred_check
          %p354 = pneg %p80
        $region30: #{tpu_custom_call.1} parent=23 // pred_check_branch
          %356 = sbr.rel (%p354) target = $region32
        $region31: #{tpu_custom_call.1} parent=23 // pred_region
          %p357 = scmp.lt.s32.totalorder %s29, 1
          %s358 = scalar_select %p357, %s29, 1
          %s359 = scalar_lea.vmem %s1, %s358
        $region32: #{tpu_custom_call.1} parent=23 // pred_fallthru
          _
        // Predicated region
        $region33: #{tpu_custom_call.1} parent=23 // pred_check
          %p360 = pneg %p106
        $region34: #{tpu_custom_call.1} parent=23 // pred_check_branch
          %362 = sbr.rel (%p360) target = $region36
        $region35: #{tpu_custom_call.1} parent=23 // pred_region
          %p363 = scmp.lt.s32.totalorder %s30, 1
          %s364 = scalar_select %p363, %s30, 1
          %s365 = smul.addr %s364, 4
          %s366 = smul.addr %s365, 4
          %s367 = scalar_lea.vmem %s2, %s366
        $region36: #{tpu_custom_call.1} parent=23 // pred_fallthru
          _
        // Predicated region
        $region37: #{tpu_custom_call.1} parent=23 // pred_check
          %p368 = pneg %p132
        $region38: #{tpu_custom_call.1} parent=23 // pred_check_branch
          %370 = sbr.rel (%p368) target = $region40
        $region39: #{tpu_custom_call.1} parent=23 // pred_region
          %p371 = scmp.lt.s32.totalorder %s30, 1
          %s372 = scalar_select %p371, %s30, 1
          %s373 = smul.addr %s372, 4
          %s374 = smul.addr %s373, 4
          %s375 = scalar_lea.vmem %s3, %s374
        $region40: #{tpu_custom_call.1} parent=23 // pred_fallthru
          _
        // Predicated region
        $region41: #{tpu_custom_call.1} parent=23 // pred_check
          %p376 = pneg %p158
        $region42: #{tpu_custom_call.1} parent=23 // pred_check_branch
          %378 = sbr.rel (%p376) target = $region44
        $region43: #{tpu_custom_call.1} parent=23 // pred_region
          %p379 = scmp.lt.s32.totalorder %s30, 1
          %s380 = scalar_select %p379, %s30, 1
          %s381 = smul.addr %s380, 4
          %s382 = smul.addr %s381, 4
          %s383 = scalar_lea.vmem %s4, %s382
        $region44: #{tpu_custom_call.1} parent=23 // pred_fallthru
          _
        // Predicated region
        $region45: #{tpu_custom_call.1} parent=23 // pred_check
          %p384 = pneg %p184
        $region46: #{tpu_custom_call.1} parent=23 // pred_check_branch
          %386 = sbr.rel (%p384) target = $region48
        $region47: #{tpu_custom_call.1} parent=23 // pred_region
          %p387 = scmp.lt.s32.totalorder %s30, 1
          %s388 = scalar_select %p387, %s30, 1
          %s389 = scalar_lea.vmem %s5, %s388
        $region48: #{tpu_custom_call.1} parent=23 // pred_fallthru
          _
        // Predicated region
        $region49: #{tpu_custom_call.1} parent=23 // pred_check
          %p390 = pneg %p210
        $region50: #{tpu_custom_call.1} parent=23 // pred_check_branch
          %392 = sbr.rel (%p390) target = $region52
        $region51: #{tpu_custom_call.1} parent=23 // pred_region
          %p393 = scmp.lt.s32.totalorder %s30, 1
          %s394 = scalar_select %p393, %s30, 1
          %s395 = smul.addr %s394, 8
          %s396 = smul.addr %s395, 4
          %s397 = scalar_lea.vmem %s6, %s396
        $region52: #{tpu_custom_call.1} parent=23 // pred_fallthru
          _
        // Predicated region
        $region53: #{tpu_custom_call.1} parent=23 // pred_check
          %p398 = pneg %p236
        $region54: #{tpu_custom_call.1} parent=23 // pred_check_branch
          %400 = sbr.rel (%p398) target = $region56
        $region55: #{tpu_custom_call.1} parent=23 // pred_region
          %p401 = scmp.lt.s32.totalorder %s30, 1
          %s402 = scalar_select %p401, %s30, 1
          %s403 = smul.addr %s402, 2
          %s404 = smul.addr %s403, 8
          %s405 = scalar_lea.vmem %s7, %s404
        $region56: #{tpu_custom_call.1} parent=23 // pred_fallthru
          _
      $region24: #{tpu_custom_call.1} parent=5 // pred_fallthru
        _
      %p406 = scmp.le.s32.totalorder 1, %s22
      %p407 = scmp.lt.s32.totalorder %s22, 5
      %p408 = pnand %p406, %p407
      %p409 = pneg %p408
      // Predicated region
      $region57: #{tpu_custom_call.1} parent=5 // pred_check
        _
      $region58: #{tpu_custom_call.1} parent=5 // pred_check_branch
        %411 = sbr.rel (%p408) target = $region60
      $region59: #{tpu_custom_call.1} parent=5 // pred_region
        %s412 = ssub.s32 %s22, 1
        %s413 = sand.u32 %s47, 1
        %s414 = scalar_lea.sflag [#allocation4], %s413
        %s415 = sand.u32 %s47, 1
        %s416 = smul.addr %s415, 4
        %s417 = scalar_lea.vmem [#allocation3], %s416
        // Predicated region
        $region61: #{tpu_custom_call.1} parent=59 // pred_check
          %p418 = pneg %p60
        $region62: #{tpu_custom_call.1} parent=59 // pred_check_branch
          %420 = sbr.rel (%p418) target = $region64
        $region63: #{tpu_custom_call.1} parent=59 // pred_region
          %422 = dma.done %s414, 64
        $region64: #{tpu_custom_call.1} parent=59 // pred_fallthru
          _
        %s423 = sand.u32 %s47, 1
        %s424 = scalar_lea.sflag [#allocation4], %s423
        %s425 = sand.u32 %s47, 1
        %s426 = smul.addr %s425, 4
        %s427 = scalar_lea.vmem [#allocation3], %s426
        %p428 = pneg %p60
        %p429 = pneg %p57
        %p430 = scmp.lt.s32.totalorder %s31, 1
        %s431 = scalar_select %p430, %s31, 1
        %s432 = scalar_lea.vmem %s1, %s431
        %p433 = pneg %p86
        %p434 = pneg %p83
        %p435 = scmp.lt.s32.totalorder %s32, 1
        %s436 = scalar_select %p435, %s32, 1
        %s437 = smul.addr %s436, 4
        %s438 = smul.addr %s437, 4
        %s439 = scalar_lea.vmem %s2, %s438
        %p440 = pneg %p112
        %p441 = pneg %p109
        %p442 = scmp.lt.s32.totalorder %s32, 1
        %s443 = scalar_select %p442, %s32, 1
        %s444 = smul.addr %s443, 4
        %s445 = smul.addr %s444, 4
        %s446 = scalar_lea.vmem %s3, %s445
        %p447 = pneg %p138
        %p448 = pneg %p135
        %p449 = scmp.lt.s32.totalorder %s32, 1
        %s450 = scalar_select %p449, %s32, 1
        %s451 = smul.addr %s450, 4
        %s452 = smul.addr %s451, 4
        %s453 = scalar_lea.vmem %s4, %s452
        %p454 = pneg %p164
        %p455 = pneg %p161
        %p456 = scmp.lt.s32.totalorder %s32, 1
        %s457 = scalar_select %p456, %s32, 1
        %s458 = scalar_lea.vmem %s5, %s457
        %p459 = pneg %p190
        %p460 = pneg %p187
        %p461 = scmp.lt.s32.totalorder %s32, 1
        %s462 = scalar_select %p461, %s32, 1
        %s463 = smul.addr %s462, 8
        %s464 = smul.addr %s463, 4
        %s465 = scalar_lea.vmem %s6, %s464
        %p466 = pneg %p216
        %p467 = pneg %p213
        %p468 = scmp.lt.s32.totalorder %s32, 1
        %s469 = scalar_select %p468, %s32, 1
        %s470 = smul.addr %s469, 2
        %s471 = smul.addr %s470, 8
        %s472 = scalar_lea.vmem %s7, %s471
        %p473 = pneg %p242
        %p474 = pneg %p239
        %p475 = pneg %p263
        %p476 = pneg %p260
        %p477 = pneg %p284
        %p478 = pneg %p281
        %p479 = pneg %p310
        %p480 = pneg %p307
        %s481 = sand.u32 %s297, 1
        %s482 = scalar_lea.sflag [#allocation5], %s481
        %s483 = sand.u32 %s297, 1
        %s484 = scalar_lea.vmem [#allocation6], %s483
        %p485 = scmp.lt.s32.totalorder %s31, 1
        %s486 = scalar_select %p485, %s31, 1
        %s487 = scalar_lea.vmem %s1, %s486
        %p488 = scmp.lt.s32.totalorder %s32, 1
        %s489 = scalar_select %p488, %s32, 1
        %s490 = smul.addr %s489, 4
        %s491 = smul.addr %s490, 4
        %s492 = scalar_lea.vmem %s2, %s491
        %p493 = scmp.lt.s32.totalorder %s32, 1
        %s494 = scalar_select %p493, %s32, 1
        %s495 = smul.addr %s494, 4
        %s496 = smul.addr %s495, 4
        %s497 = scalar_lea.vmem %s3, %s496
        %p498 = scmp.lt.s32.totalorder %s32, 1
        %s499 = scalar_select %p498, %s32, 1
        %s500 = smul.addr %s499, 4
        %s501 = smul.addr %s500, 4
        %s502 = scalar_lea.vmem %s4, %s501
        %p503 = scmp.lt.s32.totalorder %s32, 1
        %s504 = scalar_select %p503, %s32, 1
        %s505 = scalar_lea.vmem %s5, %s504
        %p506 = scmp.lt.s32.totalorder %s32, 1
        %s507 = scalar_select %p506, %s32, 1
        %s508 = smul.addr %s507, 8
        %s509 = smul.addr %s508, 4
        %s510 = scalar_lea.vmem %s6, %s509
        %p511 = scmp.lt.s32.totalorder %s32, 1
        %s512 = scalar_select %p511, %s32, 1
        %s513 = smul.addr %s512, 2
        %s514 = smul.addr %s513, 8
        %s515 = scalar_lea.vmem %s7, %s514
        %p517 = scmp.eq.s32.totalorder %s32, 0
        // Predicated region
        $region65: #{tpu_custom_call.1} parent=59 // pred_check
          %p518 = pneg %p517
        $region66: #{tpu_custom_call.1} parent=59 // pred_check_branch
          %520 = sbr.rel (%p518) target = $region68
        $region67: #{tpu_custom_call.1} parent=59 // pred_region
          %v521 = vld [vmem:[%s417] sm:$0xf]
          %vm522 = vcmask 257024
          %523 = vst.msk [vmem:[#allocation2] sm:$0xf] %vm522, %v521
        $region68: #{tpu_custom_call.1} parent=59 // pred_fallthru
          _
        %v524 = vld [vmem:[%s515] sm:$0xff]
        %v525 = vld [vmem:[%s515 + $0x8] sm:$0x1]
        %v526 = vld [vmem:[%s505] sm:$0x1]
        %v527 = vld [vmem:[#allocation2] sm:$0xf]
        %v528 = vunpack.c.l.bf16 %v527
        %v529 = vld [vmem:[%s492] sm:$0xf]
        %v530 = vld [vmem:[%s492 + $0x4] sm:$0xf]
        %v531 = vld [vmem:[%s492 + $0x8] sm:$0xf]
        %v532 = vld [vmem:[%s492 + $0xc] sm:$0xf]
        %v537 = vunpack.c.l.b16 %v529
        %v538 = vunpack.c.l.b16 %v530
        %v539 = vunpack.c.l.b16 %v531
        %v540 = vunpack.c.l.b16 %v532
        %v541 = vpack.c.b16 %v538, %v537
        %v542 = vpack.c.b16 %v540, %v539
        %vm545 = vcmask 261120
        %v547 = vsel %vm545, %v527, 0
        %549 = vmatpush.bf16.msra.mxu0 0
        %550 = vmatpush.bf16.msra.mxu0 0
        %551 = vmatpush.bf16.msra.mxu0 0
        %552 = vmatpush.bf16.msra.mxu0 0
        %553 = vmatpush.bf16.msra.mxu0 0
        %554 = vmatpush.bf16.msra.mxu0 0
        %555 = vmatpush.bf16.msra.mxu0 %v542
        %556 = vmatpush.bf16.msra.mxu0 %v541
        %557 = vmatmul.bf16.gmra.mxu0 %v547
        %v558 = vpop.f32.mrf.mxu0
        %v559 = vadd.f32 0.0, %v558
        %v560 = vpop.f32.mrf.mxu0
        %561 = vdwg.mxu0
        %v562 = vperm.slane %v524, 0
        %v563 = vadd.f32 %v559, %v562
        %v564 = vmul.f32 %v563, 0.35355338
        %v565 = vperm.slane %v524, 1
        %567 = vrot.lane.b32.xlu0 %v565, 32
        %v568 = vpop.permute.xlu0 %567
        %v570 = vadd.f32 %v559, %v568
        %v571 = vperm.slane %v524, 2
        %573 = vrot.lane.b32.xlu0 %v571, 64
        %v574 = vpop.permute.xlu0 %573
        %v576 = vadd.f32 %v559, %v574
        %v577 = vpack.c.bf16 %v564, %v564
        %579 = vrot.lane.b32.xlu0 %v577, 120
        %v580 = vpop.permute.xlu0 %579
        %581 = vrot.lane.b32.xlu0 %v577, 112
        %v582 = vpop.permute.xlu0 %581
        %583 = vrot.lane.b32.xlu0 %v577, 104
        %v584 = vpop.permute.xlu0 %583
        %v585 = vpack.c.bf16 %v570, %v570
        %587 = vrot.lane.b32.xlu0 %v585, 120
        %v588 = vpop.permute.xlu0 %587
        %589 = vrot.lane.b32.xlu0 %v585, 112
        %v590 = vpop.permute.xlu0 %589
        %591 = vrot.lane.b32.xlu0 %v585, 104
        %v592 = vpop.permute.xlu0 %591
        %v593 = vpack.c.bf16 %v576, %v576
        %595 = vrot.lane.b32.xlu0 %v593, 120
        %v596 = vpop.permute.xlu0 %595
        %597 = vrot.lane.b32.xlu0 %v593, 112
        %v598 = vpop.permute.xlu0 %597
        %599 = vrot.lane.b32.xlu0 %v593, 104
        %v600 = vpop.permute.xlu0 %599
        %v601 = vld [vmem:[%s487] sm:$0x1]
        %v603 = vperm.slane %v601, 0
        %v605 = vunpack.c.l.b16 %v585
        %v606 = vpack.c.b16 %v605, %v605
        %607 = vrot.lane.b32.xlu0 %v606, 96
        %v608 = vpop.permute.xlu0 %607
        %vm609 = vcmask 64512
        %v611 = vsel %vm609, %v577, 0
        %v614 = vsel %vm609, %v608, 0
        %616 = vmatpush.bf16.xpose.msra.mxu0 0
        %617 = vmatpush.bf16.xpose.msra.mxu0 0
        %618 = vmatpush.bf16.xpose.msra.mxu0 0
        %619 = vmatpush.bf16.xpose.msra.mxu0 0
        %620 = vmatpush.bf16.xpose.msra.mxu0 0
        %621 = vmatpush.bf16.xpose.msra.mxu0 0
        %622 = vmatpush.bf16.xpose.msra.mxu0 0
        %623 = vmatpush.bf16.xpose.msra.mxu0 %v614
        %624 = vmatmul.bf16.gmra.mxu0 %v611
        %v625 = vpop.f32.mrf.mxu0
        %v626 = vadd.f32 %v603, %v625
        %v627 = vpop.f32.mrf.mxu0
        %628 = vdwg.mxu0
        %v629 = vunpack.c.l.b16 %v588
        %v630 = vpack.c.b16 %v629, %v629
        %631 = vrot.lane.b32.xlu0 %v630, 96
        %v632 = vpop.permute.xlu0 %631
        %v634 = vsel %vm609, %v580, 0
        %v637 = vsel %vm609, %v632, 0
        %639 = vmatpush.bf16.xpose.msra.mxu0 0
        %640 = vmatpush.bf16.xpose.msra.mxu0 0
        %641 = vmatpush.bf16.xpose.msra.mxu0 0
        %642 = vmatpush.bf16.xpose.msra.mxu0 0
        %643 = vmatpush.bf16.xpose.msra.mxu0 0
        %644 = vmatpush.bf16.xpose.msra.mxu0 0
        %645 = vmatpush.bf16.xpose.msra.mxu0 0
        %646 = vmatpush.bf16.xpose.msra.mxu0 %v637
        %647 = vmatmul.bf16.gmra.mxu0 %v634
        %v648 = vpop.f32.mrf.mxu0
        %v649 = vadd.f32 %v603, %v648
        %v650 = vpop.f32.mrf.mxu0
        %651 = vdwg.mxu0
        %v652 = vunpack.c.l.b16 %v590
        %v653 = vpack.c.b16 %v652, %v652
        %654 = vrot.lane.b32.xlu0 %v653, 96
        %v655 = vpop.permute.xlu0 %654
        %v657 = vsel %vm609, %v582, 0
        %v660 = vsel %vm609, %v655, 0
        %662 = vmatpush.bf16.xpose.msra.mxu0 0
        %663 = vmatpush.bf16.xpose.msra.mxu0 0
        %664 = vmatpush.bf16.xpose.msra.mxu0 0
        %665 = vmatpush.bf16.xpose.msra.mxu0 0
        %666 = vmatpush.bf16.xpose.msra.mxu0 0
        %667 = vmatpush.bf16.xpose.msra.mxu0 0
        %668 = vmatpush.bf16.xpose.msra.mxu0 0
        %669 = vmatpush.bf16.xpose.msra.mxu0 %v660
        %670 = vmatmul.bf16.gmra.mxu0 %v657
        %v671 = vpop.f32.mrf.mxu0
        %v672 = vadd.f32 %v603, %v671
        %v673 = vpop.f32.mrf.mxu0
        %674 = vdwg.mxu0
        %v675 = vunpack.c.l.b16 %v592
        %v676 = vpack.c.b16 %v675, %v675
        %677 = vrot.lane.b32.xlu0 %v676, 96
        %v678 = vpop.permute.xlu0 %677
        %v680 = vsel %vm609, %v584, 0
        %v683 = vsel %vm609, %v678, 0
        %685 = vmatpush.bf16.xpose.msra.mxu0 0
        %686 = vmatpush.bf16.xpose.msra.mxu0 0
        %687 = vmatpush.bf16.xpose.msra.mxu0 0
        %688 = vmatpush.bf16.xpose.msra.mxu0 0
        %689 = vmatpush.bf16.xpose.msra.mxu0 0
        %690 = vmatpush.bf16.xpose.msra.mxu0 0
        %691 = vmatpush.bf16.xpose.msra.mxu0 0
        %692 = vmatpush.bf16.xpose.msra.mxu0 %v683
        %693 = vmatmul.bf16.gmra.mxu0 %v680
        %v694 = vpop.f32.mrf.mxu0
        %v695 = vadd.f32 %v603, %v694
        %v696 = vpop.f32.mrf.mxu0
        %697 = vdwg.mxu0
        %v698 = vsel %vm609, %v626, -inf
        %699 = vmax.xlane.f32.xlu0 %v698
        %v700 = vpop.xlane.xlu0 %699
        %v701 = vsel %vm609, %v649, -inf
        %702 = vmax.xlane.f32.xlu0 %v701
        %v703 = vpop.xlane.xlu0 %702
        %v704 = vsel %vm609, %v672, -inf
        %705 = vmax.xlane.f32.xlu0 %v704
        %v706 = vpop.xlane.xlu0 %705
        %v707 = vsel %vm609, %v695, -inf
        %708 = vmax.xlane.f32.xlu0 %v707
        %v709 = vpop.xlane.xlu0 %708
        %v710 = vsub.f32 %v626, %v700
        %v711 = vsub.f32 %v649, %v703
        %v712 = vsub.f32 %v672, %v706
        %v713 = vsub.f32 %v695, %v709
        %v714 = vmul.f32 %v710, 1.442695
        %v715 = vpow.pop %v714
        %v716 = vmul.f32 %v711, 1.442695
        %v717 = vpow.pop %v716
        %v718 = vmul.f32 %v712, 1.442695
        %v719 = vpow.pop %v718
        %v720 = vmul.f32 %v713, 1.442695
        %v721 = vpow.pop %v720
        %v722 = vsel %vm609, %v715, 0.0
        %723 = vadd.xlane.f32.xlu0 %v722
        %v724 = vpop.xlane.xlu0 %723
        %v725 = vsel %vm609, %v717, 0.0
        %726 = vadd.xlane.f32.xlu0 %v725
        %v727 = vpop.xlane.xlu0 %726
        %v728 = vsel %vm609, %v719, 0.0
        %729 = vadd.xlane.f32.xlu0 %v728
        %v730 = vpop.xlane.xlu0 %729
        %v731 = vsel %vm609, %v721, 0.0
        %732 = vadd.xlane.f32.xlu0 %v731
        %v733 = vpop.xlane.xlu0 %732
        %v734 = vrcp.pop %v724
        %v735 = vrcp.pop %v727
        %v736 = vrcp.pop %v730
        %v737 = vrcp.pop %v733
        %v738 = vmul.f32 %v715, %v734
        %v739 = vmul.f32 %v717, %v735
        %v740 = vmul.f32 %v719, %v736
        %v741 = vmul.f32 %v721, %v737
        %v742 = vpack.c.bf16 %v738, %v738
        %v743 = vpack.c.bf16 %v739, %v739
        %v744 = vpack.c.bf16 %v740, %v740
        %v745 = vpack.c.bf16 %v741, %v741
        %v746 = vunpack.c.l.b16 %v593
        %v747 = vpack.c.b16 %v746, %v746
        %748 = vrot.lane.b32.xlu0 %v747, 64
        %v749 = vpop.permute.xlu0 %748
        %v751 = vsel %vm609, %v742, 0
        %vm753 = vcmask 1043456
        %v755 = vsel %vm753, %v749, 0
        %757 = vmatpush.bf16.msra.mxu0 0
        %758 = vmatpush.bf16.msra.mxu0 0
        %759 = vmatpush.bf16.msra.mxu0 0
        %760 = vmatpush.bf16.msra.mxu0 0
        %761 = vmatpush.bf16.msra.mxu0 0
        %762 = vmatpush.bf16.msra.mxu0 0
        %763 = vmatpush.bf16.msra.mxu0 0
        %764 = vmatpush.bf16.msra.mxu0 %v755
        %765 = vmatmul.bf16.gmra.mxu0 %v751
        %v766 = vpop.f32.mrf.mxu0
        %v767 = vadd.f32 0.0, %v766
        %v768 = vpop.f32.mrf.mxu0
        %769 = vdwg.mxu0
        %v770 = vunpack.c.l.b16 %v596
        %v771 = vpack.c.b16 %v770, %v770
        %772 = vrot.lane.b32.xlu0 %v771, 64
        %v773 = vpop.permute.xlu0 %772
        %v775 = vsel %vm609, %v743, 0
        %v778 = vsel %vm753, %v773, 0
        %780 = vmatpush.bf16.msra.mxu0 0
        %781 = vmatpush.bf16.msra.mxu0 0
        %782 = vmatpush.bf16.msra.mxu0 0
        %783 = vmatpush.bf16.msra.mxu0 0
        %784 = vmatpush.bf16.msra.mxu0 0
        %785 = vmatpush.bf16.msra.mxu0 0
        %786 = vmatpush.bf16.msra.mxu0 0
        %787 = vmatpush.bf16.msra.mxu0 %v778
        %788 = vmatmul.bf16.gmra.mxu0 %v775
        %v789 = vpop.f32.mrf.mxu0
        %v790 = vadd.f32 0.0, %v789
        %v791 = vpop.f32.mrf.mxu0
        %792 = vdwg.mxu0
        %v793 = vunpack.c.l.b16 %v598
        %v794 = vpack.c.b16 %v793, %v793
        %795 = vrot.lane.b32.xlu0 %v794, 64
        %v796 = vpop.permute.xlu0 %795
        %v798 = vsel %vm609, %v744, 0
        %v801 = vsel %vm753, %v796, 0
        %803 = vmatpush.bf16.msra.mxu0 0
        %804 = vmatpush.bf16.msra.mxu0 0
        %805 = vmatpush.bf16.msra.mxu0 0
        %806 = vmatpush.bf16.msra.mxu0 0
        %807 = vmatpush.bf16.msra.mxu0 0
        %808 = vmatpush.bf16.msra.mxu0 0
        %809 = vmatpush.bf16.msra.mxu0 0
        %810 = vmatpush.bf16.msra.mxu0 %v801
        %811 = vmatmul.bf16.gmra.mxu0 %v798
        %v812 = vpop.f32.mrf.mxu0
        %v813 = vadd.f32 0.0, %v812
        %v814 = vpop.f32.mrf.mxu0
        %815 = vdwg.mxu0
        %v816 = vunpack.c.l.b16 %v600
        %v817 = vpack.c.b16 %v816, %v816
        %818 = vrot.lane.b32.xlu0 %v817, 64
        %v819 = vpop.permute.xlu0 %818
        %v821 = vsel %vm609, %v745, 0
        %v824 = vsel %vm753, %v819, 0
        %826 = vmatpush.bf16.msra.mxu0 0
        %827 = vmatpush.bf16.msra.mxu0 0
        %828 = vmatpush.bf16.msra.mxu0 0
        %829 = vmatpush.bf16.msra.mxu0 0
        %830 = vmatpush.bf16.msra.mxu0 0
        %831 = vmatpush.bf16.msra.mxu0 0
        %832 = vmatpush.bf16.msra.mxu0 0
        %833 = vmatpush.bf16.msra.mxu0 %v824
        %834 = vmatmul.bf16.gmra.mxu0 %v821
        %v835 = vpop.f32.mrf.mxu0
        %v836 = vadd.f32 0.0, %v835
        %v837 = vpop.f32.mrf.mxu0
        %838 = vdwg.mxu0
        %840 = vrot.lane.b32.xlu0 %v790, 8
        %v841 = vpop.permute.xlu0 %840
        %844 = vrot.lane.b32.xlu0 %v813, 16
        %v845 = vpop.permute.xlu0 %844
        %848 = vrot.lane.b32.xlu0 %v836, 24
        %v849 = vpop.permute.xlu0 %848
        %v851 = vsel %vm609, %v767, %v841
        %vm852 = vcmask 130048
        %v853 = vsel %vm852, %v851, %v845
        %vm854 = vcmask 195584
        %v855 = vsel %vm854, %v853, %v849
        %v856 = vpack.c.bf16 %v855, %v855
        %v857 = vld [vmem:[%s497] sm:$0xf]
        %v858 = vld [vmem:[%s497 + $0x4] sm:$0xf]
        %v859 = vld [vmem:[%s497 + $0x8] sm:$0xf]
        %v860 = vld [vmem:[%s497 + $0xc] sm:$0xf]
        %v861 = vperm.slane %v524, 3
        %v866 = vunpack.c.l.b16 %v857
        %v867 = vunpack.c.l.b16 %v858
        %v868 = vunpack.c.l.b16 %v859
        %v869 = vunpack.c.l.b16 %v860
        %v870 = vpack.c.b16 %v867, %v866
        %v871 = vpack.c.b16 %v869, %v868
        %v875 = vsel %vm545, %v856, 0
        %877 = vmatpush.bf16.msra.mxu0 0
        %878 = vmatpush.bf16.msra.mxu0 0
        %879 = vmatpush.bf16.msra.mxu0 0
        %880 = vmatpush.bf16.msra.mxu0 0
        %881 = vmatpush.bf16.msra.mxu0 0
        %882 = vmatpush.bf16.msra.mxu0 0
        %883 = vmatpush.bf16.msra.mxu0 %v871
        %884 = vmatpush.bf16.msra.mxu0 %v870
        %885 = vmatmul.bf16.gmra.mxu0 %v875
        %v886 = vpop.f32.mrf.mxu0
        %v887 = vadd.f32 %v861, %v886
        %v888 = vpop.f32.mrf.mxu0
        %889 = vdwg.mxu0
        %v890 = vadd.f32 %v528, %v887
        %v891 = vsel %vm545, %v890, 0.0
        %892 = vadd.xlane.f32.xlu0 %v891
        %v893 = vpop.xlane.xlu0 %892
        %v894 = vrcp.pop 32.0
        %v895 = vmul.f32 32.0, %v894
        %v896 = vsub.f32 1.0, %v895
        %v897 = vmul.f32 %v894, %v896
        %v898 = vadd.f32 %v894, %v897
        %vm899 = vweird.f32 %v894
        %v900 = vsel %vm899, %v894, %v898
        %v901 = vmul.f32 %v893, %v900
        %v902 = vsub.f32 %v890, %v901
        %v903 = vmul.f32 %v902, %v902
        %v904 = vsel %vm545, %v903, 0.0
        %905 = vadd.xlane.f32.xlu0 %v904
        %v906 = vpop.xlane.xlu0 %905
        %v907 = vmul.f32 %v906, %v900
        %v908 = vadd.f32 %v907, 1e-12
        %v909 = vrsqrt.pop %v908
        %v910 = vmul.f32 %v909, %v908
        %v911 = vmul.f32 %v910, %v909
        %v912 = vmul.f32 0.5, %v911
        %v913 = vsub.f32 1.5, %v912
        %v914 = vmul.f32 %v909, %v913
        %vm915 = vweird.f32 %v908
        %vm916 = vweird.f32 %v909
        %vm917 = vmor %vm915, %vm916
        %v918 = vsel %vm917, %v909, %v914
        %v919 = vmul.f32 %v902, %v918
        %v920 = vperm.slane %v524, 4
        %v921 = vmul.f32 %v919, %v920
        %v922 = vperm.slane %v524, 5
        %v923 = vadd.f32 %v921, %v922
        %v924 = vpack.c.bf16 %v923, %v923
        %v925 = vld [vmem:[%s502] sm:$0xf]
        %v926 = vld [vmem:[%s502 + $0x4] sm:$0xf]
        %v927 = vld [vmem:[%s502 + $0x8] sm:$0xf]
        %v928 = vld [vmem:[%s502 + $0xc] sm:$0xf]
        %v930 = vperm.slane %v526, 0
        %v936 = vunpack.c.l.b16 %v925
        %v937 = vunpack.c.l.b16 %v926
        %v938 = vunpack.c.l.b16 %v927
        %v939 = vunpack.c.l.b16 %v928
        %v940 = vpack.c.b16 %v937, %v936
        %v941 = vpack.c.b16 %v939, %v938
        %v945 = vsel %vm545, %v924, 0
        %947 = vmatpush.bf16.msra.mxu0 0
        %948 = vmatpush.bf16.msra.mxu0 0
        %949 = vmatpush.bf16.msra.mxu0 0
        %950 = vmatpush.bf16.msra.mxu0 0
        %951 = vmatpush.bf16.msra.mxu0 0
        %952 = vmatpush.bf16.msra.mxu0 0
        %953 = vmatpush.bf16.msra.mxu0 %v941
        %954 = vmatpush.bf16.msra.mxu0 %v940
        %955 = vmatmul.bf16.gmra.mxu0 %v945
        %v956 = vpop.f32.mrf.mxu0
        %v957 = vadd.f32 %v930, %v956
        %v958 = vpop.f32.mrf.mxu0
        %959 = vdwg.mxu0
        %v960 = vmul.f32 %v957, 0.5
        %v961 = vmul.f32 %v957, 0.044715
        %v962 = vmul.f32 %v961, %v957
        %v963 = vmul.f32 %v962, %v957
        %v964 = vadd.f32 %v957, %v963
        %v965 = vmul.f32 %v964, 0.7978846
        %v966 = vtanh.pop %v965
        %v967 = vadd.f32 %v966, 1.0
        %v968 = vmul.f32 %v960, %v967
        %v969 = vpack.c.bf16 %v968, %v968
        %v970 = vld [vmem:[%s510] sm:$0xf]
        %v971 = vld [vmem:[%s510 + $0x4] sm:$0xf]
        %v972 = vld [vmem:[%s510 + $0x8] sm:$0xf]
        %v973 = vld [vmem:[%s510 + $0xc] sm:$0xf]
        %v974 = vld [vmem:[%s510 + $0x10] sm:$0xf]
        %v975 = vld [vmem:[%s510 + $0x14] sm:$0xf]
        %v976 = vld [vmem:[%s510 + $0x18] sm:$0xf]
        %v977 = vld [vmem:[%s510 + $0x1c] sm:$0xf]
        %v978 = vperm.slane %v524, 6
        %v987 = vunpack.c.l.b16 %v970
        %v988 = vunpack.c.l.b16 %v971
        %v989 = vunpack.c.l.b16 %v972
        %v990 = vunpack.c.l.b16 %v973
        %v991 = vunpack.c.l.b16 %v974
        %v992 = vunpack.c.l.b16 %v975
        %v993 = vunpack.c.l.b16 %v976
        %v994 = vunpack.c.l.b16 %v977
        %v995 = vpack.c.b16 %v988, %v987
        %v996 = vpack.c.b16 %v990, %v989
        %v997 = vpack.c.b16 %v992, %v991
        %v998 = vpack.c.b16 %v994, %v993
        %vm1003 = vcmask 523264
        %v1005 = vsel %vm1003, %v969, 0
        %1007 = vmatpush.bf16.msra.mxu0 0
        %1008 = vmatpush.bf16.msra.mxu0 0
        %1009 = vmatpush.bf16.msra.mxu0 0
        %1010 = vmatpush.bf16.msra.mxu0 0
        %1011 = vmatpush.bf16.msra.mxu0 %v998
        %1012 = vmatpush.bf16.msra.mxu0 %v997
        %1013 = vmatpush.bf16.msra.mxu0 %v996
        %1014 = vmatpush.bf16.msra.mxu0 %v995
        %1015 = vmatmul.bf16.gmra.mxu0 %v1005
        %v1016 = vpop.f32.mrf.mxu0
        %v1017 = vadd.f32 %v978, %v1016
        %v1018 = vpop.f32.mrf.mxu0
        %1019 = vdwg.mxu0
        %v1020 = vadd.f32 %v923, %v1017
        %v1021 = vsel %vm545, %v1020, 0.0
        %1022 = vadd.xlane.f32.xlu0 %v1021
        %v1023 = vpop.xlane.xlu0 %1022
        %v1024 = vmul.f32 %v1023, %v900
        %v1025 = vsub.f32 %v1020, %v1024
        %v1026 = vmul.f32 %v1025, %v1025
        %v1027 = vsel %vm545, %v1026, 0.0
        %1028 = vadd.xlane.f32.xlu0 %v1027
        %v1029 = vpop.xlane.xlu0 %1028
        %v1030 = vmul.f32 %v1029, %v900
        %v1031 = vadd.f32 %v1030, 1e-12
        %v1032 = vrsqrt.pop %v1031
        %v1033 = vmul.f32 %v1032, %v1031
        %v1034 = vmul.f32 %v1033, %v1032
        %v1035 = vmul.f32 0.5, %v1034
        %v1036 = vsub.f32 1.5, %v1035
        %v1037 = vmul.f32 %v1032, %v1036
        %vm1038 = vweird.f32 %v1031
        %vm1039 = vweird.f32 %v1032
        %vm1040 = vmor %vm1038, %vm1039
        %v1041 = vsel %vm1040, %v1032, %v1037
        %v1042 = vmul.f32 %v1025, %v1041
        %v1043 = vperm.slane %v524, 7
        %v1044 = vmul.f32 %v1042, %v1043
        %v1045 = vperm.slane %v525, 0
        %v1046 = vadd.f32 %v1044, %v1045
        %v1047 = vpack.c.bf16 %v1046, %v1046
        %vm1048 = vcmask 257024
        %1049 = vst.msk [vmem:[#allocation2] sm:$0xf] %vm1048, %v1047
        %p1050 = scmp.eq.s32.totalorder %s32, 1
        // Predicated region
        $region69: #{tpu_custom_call.1} parent=59 // pred_check
          %p1051 = pneg %p1050
        $region70: #{tpu_custom_call.1} parent=59 // pred_check_branch
          %1053 = sbr.rel (%p1051) target = $region72
        $region71: #{tpu_custom_call.1} parent=59 // pred_region
          %v1054 = vld [vmem:[%s8] sm:$0xf]
          %v1055 = vld [vmem:[%s8 + $0x4] sm:$0xf]
          %v1056 = vld [vmem:[%s8 + $0x8] sm:$0xf]
          %v1057 = vld [vmem:[%s8 + $0xc] sm:$0xf]
          %v1058 = vld [vmem:[%s9] sm:$0x1]
          %v1063 = vunpack.c.l.b16 %v1054
          %v1064 = vunpack.c.l.b16 %v1055
          %v1065 = vunpack.c.l.b16 %v1056
          %v1066 = vunpack.c.l.b16 %v1057
          %v1067 = vpack.c.b16 %v1064, %v1063
          %v1068 = vpack.c.b16 %v1066, %v1065
          %v1072 = vsel %vm545, %v1047, 0
          %1074 = vmatpush.bf16.msra.mxu0 0
          %1075 = vmatpush.bf16.msra.mxu0 0
          %1076 = vmatpush.bf16.msra.mxu0 0
          %1077 = vmatpush.bf16.msra.mxu0 0
          %1078 = vmatpush.bf16.msra.mxu0 0
          %1079 = vmatpush.bf16.msra.mxu0 0
          %1080 = vmatpush.bf16.msra.mxu0 %v1068
          %1081 = vmatpush.bf16.msra.mxu0 %v1067
          %1082 = vmatmul.bf16.gmra.mxu0 %v1072
          %v1083 = vpop.f32.mrf.mxu0
          %v1084 = vadd.f32 %v1058, %v1083
          %v1085 = vpop.f32.mrf.mxu0
          %1086 = vdwg.mxu0
          %1087 = vst [vmem:[%s484] sm:$0x1] %v1084
        $region72: #{tpu_custom_call.1} parent=59 // pred_fallthru
          _
        %s1088 = sand.u32 %s297, 1
        %s1089 = scalar_lea.sflag [#allocation5], %s1088
        %s1090 = sand.u32 %s297, 1
        %s1091 = scalar_lea.vmem [#allocation6], %s1090
        // Predicated region
        $region73: #{tpu_custom_call.1} parent=59 // pred_check
          %p1092 = pneg %p307
        $region74: #{tpu_custom_call.1} parent=59 // pred_check_branch
          %1094 = sbr.rel (%p1092) target = $region76
        $region75: #{tpu_custom_call.1} parent=59 // pred_region
          %1096 = vsyncadd %s1089, 0
          %s1097 = scalar_lea.hbm %s10, %s31
          %s1099 = sshll.u32 %s1091, 4
          %s1100 = int_to_ptr.vmem [resolvable:$true] %s1099
          %s1101 = sshll.u32 %s1097, 4
          %s1102 = int_to_ptr.hbm [resolvable:$true] %s1101
          %1104 = dma.vmem_to_hbm [thread:$0]  %s1100, 16, %s1102, %s1089
        $region76: #{tpu_custom_call.1} parent=59 // pred_fallthru
          _
      $region60: #{tpu_custom_call.1} parent=5 // pred_fallthru
        _
      %p1105 = scmp.le.s32.totalorder 2, %s22
      // Predicated region
      $region77: #{tpu_custom_call.1} parent=5 // pred_check
        %p1106 = pneg %p1105
      $region78: #{tpu_custom_call.1} parent=5 // pred_check_branch
        %1108 = sbr.rel (%p1106) target = $region80
      $region79: #{tpu_custom_call.1} parent=5 // pred_region
        %s1109 = ssub.s32 %s22, 2
        // Predicated region
        $region81: #{tpu_custom_call.1} parent=79 // pred_check
          %p1110 = pneg %p313
        $region82: #{tpu_custom_call.1} parent=79 // pred_check_branch
          %1112 = sbr.rel (%p1110) target = $region84
        $region83: #{tpu_custom_call.1} parent=79 // pred_region
          %s1113 = sand.u32 %s298, 1
          %s1114 = scalar_lea.sflag [#allocation5], %s1113
          %s1115 = sand.u32 %s298, 1
          %s1116 = scalar_lea.vmem [#allocation6], %s1115
          %1118 = dma.done %s1114, 16
        $region84: #{tpu_custom_call.1} parent=79 // pred_fallthru
          _
      $region80: #{tpu_custom_call.1} parent=5 // pred_fallthru
        _
    $region6: #{tpu_custom_call.1} parent=1 // loop_footer
      %s26 = sadd.s32 1, %s22
    $region7: #{tpu_custom_call.1} parent=1 // loop_footer_branch
      %21 = sbr.rel target = $region3
    $region8: #{tpu_custom_call.1} parent=1 // loop_exit
      _
    %1119 = vsyncpa [#allocation4], 1
    %s1120 = scalar_lea.sflag [#allocation4], 1
    %1121 = vsyncpa %s1120, 1
    %1122 = vsyncpa [#allocation5], 1
    %s1123 = scalar_lea.sflag [#allocation5], 1
    %1124 = vsyncpa %s1123, 1

</llo_original>
